<compile_context>
chip_gen: v7x
topology: tpu7x:2x2x1
jax: 0.10.0
libtpu: 0.0.40
codegen_flags: <defaults>
</compile_context>

<pallas_src>
import functools

import jax
import jax.numpy as jnp
from jax.experimental import pallas as pl
from jax.experimental.pallas import tpu as pltpu


def _round_up(a, m):
    return ((a + m - 1) // m) * m


def _device_kind():
    try:
        return jax.devices()[0].device_kind.lower()
    except Exception:
        return ""


def _has_bf16_eup():
    # v6e / v7x have a bf16 EUP path; v5e and older do not.
    k = _device_kind()
    return ("v6" in k) or ("v7" in k) or ("7x" in k)


def _is_v7x():
    k = _device_kind()
    return ("v7" in k) or ("7x" in k)


def self_lstm_kernel(hd, n_c, cp, gp, cv, hw_chunk, n_splits, use_bf16_exp,
                     x_ref, h_ref, c_ref,
                     wx_ref, wh_ref, b_ref, wo_ref, gamma_ref,
                     h_out_ref, c_out_ref):
    """One (batch, query-chunk) grid step.

    x_ref : (Cin, HW) f32      h_ref : (hd, HW) f32      c_ref : (hd, HWq) f32
    wx_ref: (R, Cin)  bf16     wh_ref: (R, hd)  bf16     b_ref : (R, 1)  f32
        stacked rows: [ Q (cp) | Wo@[x;h]+bo gates (gp) | K (cp) | V+ones (cv) ]
        (query-side rows need only this chunk's columns; key-side rows need all)
    wo_ref: (4*hd, cv) bf16 (zero-padded columns beyond n_c)
    gamma_ref: (1, 1) f32 in SMEM
    h_out_ref / c_out_ref: (hd, HWq) f32
    """
    f32, bf16 = jnp.float32, jnp.bfloat16
    g4 = 4 * hd
    n_qg = cp + gp          # query-side rows (Q + gate residual)
    n_kv = cp + cv          # key-side rows (K + V(+ones))

    x_b = x_ref[...].astype(bf16)                      # (Cin, HW)
    h_b = h_ref[...].astype(bf16)                      # (hd, HW)

    if n_splits == 1:
        # Single fused projection: Q | gates | K | V(+ones).
        big = (jnp.dot(wx_ref[...], x_b, preferred_element_type=f32)
               + jnp.dot(wh_ref[...], h_b, preferred_element_type=f32)
               + b_ref[...])                           # (R, HW) f32
        qg = big[0:n_qg]
        kv = big[n_qg:n_qg + n_kv]
    else:
        # v7x query split: Q / gate-residual rows over this core's query chunk
        # only; K / V rows over the full spatial extent (keys are shared).
        q0 = pl.multiple_of(pl.program_id(1) * hw_chunk, 128)
        x_q = x_ref[:, pl.ds(q0, hw_chunk)].astype(bf16)
        h_q = h_ref[:, pl.ds(q0, hw_chunk)].astype(bf16)
        qg = (jnp.dot(wx_ref[0:n_qg, :], x_q, preferred_element_type=f32)
              + jnp.dot(wh_ref[0:n_qg, :], h_q, preferred_element_type=f32)
              + b_ref[0:n_qg, :])                      # (n_qg, HWq)
        kv = (jnp.dot(wx_ref[n_qg:n_qg + n_kv, :], x_b, preferred_element_type=f32)
              + jnp.dot(wh_ref[n_qg:n_qg + n_kv, :], h_b, preferred_element_type=f32)
              + b_ref[n_qg:n_qg + n_kv, :])            # (n_kv, HW)

    q_b = qg[0:cp].astype(bf16)                        # (cp, HWq)
    gates_resid = qg[cp:cp + g4]                       # (4*hd, HWq) f32
    k_b = kv[0:cp].astype(bf16)                        # (cp, HWk)
    v_b = kv[cp:cp + cv].astype(bf16)                  # (cv, HWk), row n_c == 1.0

    # Keys on sublanes, queries on lanes: scores_T[j, i] = sum_c K[c, j] * Q[c, i]
    scores_t = jax.lax.dot_general(k_b, q_b, (((0,), (0,)), ((), ())),
                                   preferred_element_type=f32)      # (HWk, HWq)
    m = jnp.max(scores_t, axis=0, keepdims=True)                    # (1, HWq) lane-dense
    if use_bf16_exp:
        p_t = jnp.exp((scores_t - m).astype(bf16))                  # bf16 EUP (v6e/v7x)
    else:
        p_t = jnp.exp(scores_t - m).astype(bf16)                    # f32 EUP (v5e)

    # Canonical PV matmul (no transpose of the (HW,HW) p tile).
    # sa0[c, i] = sum_j V[c, j] * p_t[j, i] ; row n_c is the softmax denominator.
    sa0 = jnp.dot(v_b, p_t, preferred_element_type=f32)             # (cv, HWq)

    # gamma folded into the (1, HWq) normalizer; exact reciprocal is ~free on 1 row.
    inv = gamma_ref[0, 0] * pl.reciprocal(sa0[n_c:n_c + 1, :], approx=False)
    sa_n = (sa0 * inv).astype(bf16)                                 # gamma-scaled, normalized

    # gates = Wo @ (gamma * selfAtten_normalized) + (Wo @ combined + bo)
    # (wo_ref column n_c is zero, so the scaled ones-row contributes nothing)
    gates = (jnp.dot(wo_ref[...], sa_n, preferred_element_type=f32)
             + gates_resid)                                         # (4*hd, HWq) f32

    i_g = jax.nn.sigmoid(gates[0 * hd:1 * hd])
    f_g = jax.nn.sigmoid(gates[1 * hd:2 * hd])
    o_g = jax.nn.sigmoid(gates[2 * hd:3 * hd])
    g_g = jnp.tanh(gates[3 * hd:4 * hd])

    c_next = f_g * c_ref[...] + i_g * g_g
    h_next = o_g * jnp.tanh(c_next)

    h_out_ref[...] = h_next.astype(h_out_ref.dtype)
    c_out_ref[...] = c_next.astype(c_out_ref.dtype)


def pack_self_lstm_params(params, input_dim, hidden_dim):
    """One-time packing of the stacked projection weights (hoisted out of the
    per-timestep path; call once and reuse across a recurrent rollout)."""
    f32, bf16 = jnp.float32, jnp.bfloat16
    C = input_dim + hidden_dim
    G = 4 * hidden_dim
    Cp = _round_up(C, 16)          # bf16 packs 16 rows/vreg -> 16-align row blocks
    Gp = _round_up(G, 16)
    Cv = _round_up(C + 1, 16)      # +1 "ones" row for the softmax denominator
    off_q, off_g, off_k, off_v = 0, Cp, Cp + Gp, Cp + Gp + Cp
    R = off_v + Cv

    W_all = jnp.zeros((R, C), f32)
    W_all = W_all.at[off_q:off_q + C].set(params['wq'].astype(f32))
    W_all = W_all.at[off_g:off_g + G].set(params['wo'].astype(f32))
    W_all = W_all.at[off_k:off_k + C].set(params['wk'].astype(f32))
    W_all = W_all.at[off_v:off_v + C].set(params['wv'].astype(f32))

    b_all = jnp.zeros((R,), f32)
    b_all = b_all.at[off_q:off_q + C].set(params['bq'].astype(f32))
    b_all = b_all.at[off_g:off_g + G].set(params['bo'].astype(f32))
    b_all = b_all.at[off_k:off_k + C].set(params['bk'].astype(f32))
    b_all = b_all.at[off_v:off_v + C].set(params['bv'].astype(f32))
    b_all = b_all.at[off_v + C].set(1.0)   # ones row -> softmax denominator via PV matmul

    wo_pad = jnp.zeros((G, Cv), f32).at[:, :C].set(params['wo'].astype(f32)).astype(bf16)

    return {
        'w_x': W_all[:, :input_dim].astype(bf16),   # (R, Cin)
        'w_h': W_all[:, input_dim:].astype(bf16),   # (R, hd)
        'b': b_all.reshape(R, 1),                   # (R, 1) f32
        'wo': wo_pad,                               # (4*hd, Cv) bf16
        'gamma': params['gamma'].reshape(1, 1).astype(f32),
    }


def self_lstm_cell(x, h_cur, c_cur, packed, *, q_splits=None):
    """x: (B, Cin, H, W); h_cur, c_cur: (B, hd, H, W).  Returns (h_next, c_next) NCHW."""
    f32 = jnp.float32

    B, Cin, H, W = x.shape
    hd = h_cur.shape[1]
    C = Cin + hd
    G = 4 * hd
    HW = H * W

    w_x, w_h, b_all = packed['w_x'], packed['w_h'], packed['b']
    wo_pad, gamma = packed['wo'], packed['gamma']
    R = w_x.shape[0]
    Cv = wo_pad.shape[1]
    Gp = _round_up(G, 16)
    Cp = (R - Gp - Cv) // 2

    if q_splits is None:
        # v7x has two TensorCores; an odd batch with grid=(B,) leaves one idle,
        # so split the query/lane axis there. Single-TC chips (v5e/v6e) keep one
        # chunk: the grid is a serial loop, extra steps only add ~0.35us each.
        q_splits = 2 if (B % 2 == 1 and HW % 256 == 0 and _is_v7x()) else 1
    hw_chunk = HW // q_splits

    # NCHW -> (B, C, HW): pure reshape, channels on sublanes, spatial on lanes.
    x_flat = x.reshape(B, Cin, HW).astype(f32)
    h_flat = h_cur.reshape(B, hd, HW).astype(f32)
    c_flat = c_cur.reshape(B, hd, HW).astype(f32)

    kernel = functools.partial(self_lstm_kernel, hd, C, Cp, Gp, Cv,
                               hw_chunk, q_splits, _has_bf16_eup())

    # Advisory cost estimate for the XLA scheduler.
    flops = 2 * B * HW * (R * C + Cp * HW + Cv * HW + G * Cv)
    transcendentals = B * HW * (HW + 5 * hd + 1)
    bytes_accessed = (4 * B * HW * (Cin + 4 * hd)
                      + 2 * (R * C + G * Cv) + 4 * (R + 1))

    h_out, c_out = pl.pallas_call(
        kernel,
        out_shape=(jax.ShapeDtypeStruct((B, hd, HW), f32),
                   jax.ShapeDtypeStruct((B, hd, HW), f32)),
        grid_spec=pltpu.PrefetchScalarGridSpec(
            num_scalar_prefetch=0,
            grid=(B, q_splits),
            in_specs=[
                pl.BlockSpec((None, Cin, HW), lambda b, s: (b, 0, 0)),        # x (full: keys)
                pl.BlockSpec((None, hd, HW), lambda b, s: (b, 0, 0)),         # h_cur (full: keys)
                pl.BlockSpec((None, hd, hw_chunk), lambda b, s: (b, 0, s)),   # c_cur (query chunk)
                pl.BlockSpec((R, Cin), lambda b, s: (0, 0)),                  # stacked W (x part)
                pl.BlockSpec((R, hd), lambda b, s: (0, 0)),                   # stacked W (h part)
                pl.BlockSpec((R, 1), lambda b, s: (0, 0)),                    # stacked bias
                pl.BlockSpec((G, Cv), lambda b, s: (0, 0)),                   # Wo (padded cols)
                pl.BlockSpec(memory_space=pltpu.MemorySpace.SMEM),            # gamma
            ],
            out_specs=[
                pl.BlockSpec((None, hd, hw_chunk), lambda b, s: (b, 0, s)),   # h_next
                pl.BlockSpec((None, hd, hw_chunk), lambda b, s: (b, 0, s)),   # c_next
            ],
        ),
        compiler_params=pltpu.CompilerParams(
            dimension_semantics=("parallel", "parallel"),
            vmem_limit_bytes=32 * 1024 * 1024,
        ),
        cost_estimate=pl.CostEstimate(flops=flops,
                                      transcendentals=transcendentals,
                                      bytes_accessed=bytes_accessed),
    )(x_flat, h_flat, c_flat, w_x, w_h, b_all, wo_pad, gamma)

    return h_out.reshape(B, hd, H, W), c_out.reshape(B, hd, H, W)


def reference_self_lstm_cell(x, h_cur, c_cur, params):
    """Pure-JAX reproduction of the PyTorch forward (NCHW) for validation."""
    combined = jnp.concatenate([x, h_cur], axis=1)
    B, C, H, W = combined.shape

    def conv1x1(a, w, b):
        y = jnp.einsum('bchw,oc->bohw', a, w)
        return y + b[None, :, None, None]

    Q = conv1x1(combined, params['wq'], params['bq']).reshape(B, -1, H * W)
    K = conv1x1(combined, params['wk'], params['bk']).reshape(B, -1, H * W)
    V = conv1x1(combined, params['wv'], params['bv']).reshape(B, C, H * W)
    attn = jax.nn.softmax(jnp.einsum('bci,bcj->bij', Q, K), axis=-1)
    sa = jnp.einsum('bcj,bij->bci', V, attn).reshape(B, C, H, W)
    sa = params['gamma'] * sa + combined
    gates = conv1x1(sa, params['wo'], params['bo'])
    cc_i, cc_f, cc_o, cc_g = jnp.split(gates, 4, axis=1)
    i = jax.nn.sigmoid(cc_i)
    f = jax.nn.sigmoid(cc_f)
    o = jax.nn.sigmoid(cc_o)
    g = jnp.tanh(cc_g)
    c_next = f * c_cur + i * g
    h_next = o * jnp.tanh(c_next)
    return h_next, c_next


if __name__ == "__main__":
    B, input_dim, hidden_dim, H, W = 2, 4, 8, 16, 16
    C = input_dim + hidden_dim

    key = jax.random.PRNGKey(0)
    ks = jax.random.split(key, 12)

    # deterministic synthetic parameters (shapes from the module __init__,
    # kernel_size=(1,1), bias=True)
    params = {
        'wq': 0.1 * jax.random.normal(ks[0], (C, C), jnp.float32),
        'bq': 0.1 * jax.random.normal(ks[1], (C,), jnp.float32),
        'wk': 0.1 * jax.random.normal(ks[2], (C, C), jnp.float32),
        'bk': 0.1 * jax.random.normal(ks[3], (C,), jnp.float32),
        'wv': 0.1 * jax.random.normal(ks[4], (C, C), jnp.float32),
        'bv': 0.1 * jax.random.normal(ks[5], (C,), jnp.float32),
        'wo': 0.1 * jax.random.normal(ks[6], (4 * hidden_dim, C), jnp.float32),
        'bo': 0.1 * jax.random.normal(ks[7], (4 * hidden_dim,), jnp.float32),
        'gamma': jnp.ones((1,), jnp.float32),   # nn.Parameter(torch.ones(1))
    }

    x = jax.random.normal(ks[8], (B, input_dim, H, W), jnp.float32)
    h0 = jax.random.normal(ks[9], (B, hidden_dim, H, W), jnp.float32)
    c0 = jax.random.normal(ks[10], (B, hidden_dim, H, W), jnp.float32)

    # One-time weight packing (hoisted out of the per-timestep path).
    packed = pack_self_lstm_params(params, input_dim, hidden_dim)
    packed = jax.tree_util.tree_map(jax.block_until_ready, packed)

    h_next, c_next = self_lstm_cell(x, h0, c0, packed)
    jax.block_until_ready((h_next, c_next))

    h_ref, c_ref = reference_self_lstm_cell(x, h0, c0, params)
    assert h_next.shape == (B, hidden_dim, H, W)
    assert c_next.shape == (B, hidden_dim, H, W)
    # bf16 MXU operands -> slightly relaxed tolerance vs the f32 reference
    assert jnp.allclose(h_next, h_ref, atol=2e-2, rtol=2e-2)
    assert jnp.allclose(c_next, c_ref, atol=2e-2, rtol=2e-2)

    print("KERNEL_OK")
</pallas_src>

<mosaic_0001>
module attributes {stable_mosaic.version = 11 : i64} {
  func.func @self_lstm_kernel(%arg0: i32, %arg1: i32, %arg2: memref<1x4x256xf32, #tpu.memory_space<vmem>>, %arg3: memref<1x8x256xf32, #tpu.memory_space<vmem>>, %arg4: memref<1x8x256xf32, #tpu.memory_space<vmem>>, %arg5: memref<80x4xbf16, #tpu.memory_space<vmem>>, %arg6: memref<80x8xbf16, #tpu.memory_space<vmem>>, %arg7: memref<80x1xf32, #tpu.memory_space<vmem>>, %arg8: memref<32x16xbf16, #tpu.memory_space<vmem>>, %arg9: memref<1x1xf32, #tpu.memory_space<smem>>, %arg10: memref<1x8x256xf32, #tpu.memory_space<vmem>>, %arg11: memref<1x8x256xf32, #tpu.memory_space<vmem>>) attributes {dimension_semantics = [#tpu.dimension_semantics<parallel>, #tpu.dimension_semantics<parallel>], iteration_bounds = array<i64: 2, 1>, scalar_prefetch = 0 : i64, scratch_operands = 0 : i64, tpu.core_type = #tpu.core_type<tc>, window_params = [{transform_indices = @transform_0, window_bounds = array<i64: 1, 4, 256>}, {transform_indices = @transform_1, window_bounds = array<i64: 1, 8, 256>}, {transform_indices = @transform_2, window_bounds = array<i64: 1, 8, 256>}, {pipeline_mode = #tpu.pipeline_mode<synchronous>, transform_indices = @transform_3, window_bounds = array<i64: 80, 4>}, {pipeline_mode = #tpu.pipeline_mode<synchronous>, transform_indices = @transform_4, window_bounds = array<i64: 80, 8>}, {pipeline_mode = #tpu.pipeline_mode<synchronous>, transform_indices = @transform_5, window_bounds = array<i64: 80, 1>}, {pipeline_mode = #tpu.pipeline_mode<synchronous>, transform_indices = @transform_6, window_bounds = array<i64: 32, 16>}, {transform_indices = @transform_7, window_bounds = array<i64: 1, 1>}, {transform_indices = @transform_8, window_bounds = array<i64: 1, 8, 256>}, {transform_indices = @transform_9, window_bounds = array<i64: 1, 8, 256>}]} {
    %c0 = arith.constant 0 : index
    %c0_0 = arith.constant 0 : index
    %c0_1 = arith.constant 0 : index
    %0 = vector.load %arg2[%c0, %c0_0, %c0_1] : memref<1x4x256xf32, #tpu.memory_space<vmem>>, vector<1x4x256xf32>
    %1 = vector.shape_cast %0 : vector<1x4x256xf32> to vector<4x256xf32>
    %2 = arith.truncf %1 : vector<4x256xf32> to vector<4x256xbf16>
    %c0_2 = arith.constant 0 : index
    %c0_3 = arith.constant 0 : index
    %c0_4 = arith.constant 0 : index
    %3 = vector.load %arg3[%c0_2, %c0_3, %c0_4] : memref<1x8x256xf32, #tpu.memory_space<vmem>>, vector<1x8x256xf32>
    %4 = vector.shape_cast %3 : vector<1x8x256xf32> to vector<8x256xf32>
    %5 = arith.truncf %4 : vector<8x256xf32> to vector<8x256xbf16>
    %c0_5 = arith.constant 0 : index
    %c0_6 = arith.constant 0 : index
    %6 = vector.load %arg5[%c0_5, %c0_6] : memref<80x4xbf16, #tpu.memory_space<vmem>>, vector<80x4xbf16>
    %cst = arith.constant dense<0.000000e+00> : vector<80x256xf32>
    %7 = tpu.matmul %6, %2, %cst {dimension_numbers = #tpu.dot_dimension_numbers<[1], [0], [0], [1], [0, 0, 1, 1], [], []>} : vector<80x4xbf16>, vector<4x256xbf16>, vector<80x256xf32> -> vector<80x256xf32>
    %c0_7 = arith.constant 0 : index
    %c0_8 = arith.constant 0 : index
    %8 = vector.load %arg6[%c0_7, %c0_8] : memref<80x8xbf16, #tpu.memory_space<vmem>>, vector<80x8xbf16>
    %cst_9 = arith.constant dense<0.000000e+00> : vector<80x256xf32>
    %9 = tpu.matmul %8, %5, %cst_9 {dimension_numbers = #tpu.dot_dimension_numbers<[1], [0], [0], [1], [0, 0, 1, 1], [], []>} : vector<80x8xbf16>, vector<8x256xbf16>, vector<80x256xf32> -> vector<80x256xf32>
    %10 = arith.addf %7, %9 : vector<80x256xf32>
    %c0_10 = arith.constant 0 : index
    %c0_11 = arith.constant 0 : index
    %11 = vector.load %arg7[%c0_10, %c0_11] : memref<80x1xf32, #tpu.memory_space<vmem>>, vector<80x1xf32>
    %12 = vector.broadcast %11 : vector<80x1xf32> to vector<80x256xf32>
    %13 = arith.addf %10, %12 : vector<80x256xf32>
    %14 = vector.extract_strided_slice %13 {offsets = [0, 0], sizes = [48, 256], strides = [1, 1]} : vector<80x256xf32> to vector<48x256xf32>
    %15 = vector.extract_strided_slice %13 {offsets = [48, 0], sizes = [32, 256], strides = [1, 1]} : vector<80x256xf32> to vector<32x256xf32>
    %16 = vector.extract_strided_slice %14 {offsets = [0, 0], sizes = [16, 256], strides = [1, 1]} : vector<48x256xf32> to vector<16x256xf32>
    %17 = arith.truncf %16 : vector<16x256xf32> to vector<16x256xbf16>
    %18 = vector.extract_strided_slice %14 {offsets = [16, 0], sizes = [32, 256], strides = [1, 1]} : vector<48x256xf32> to vector<32x256xf32>
    %19 = vector.extract_strided_slice %15 {offsets = [0, 0], sizes = [16, 256], strides = [1, 1]} : vector<32x256xf32> to vector<16x256xf32>
    %20 = arith.truncf %19 : vector<16x256xf32> to vector<16x256xbf16>
    %21 = vector.extract_strided_slice %15 {offsets = [16, 0], sizes = [16, 256], strides = [1, 1]} : vector<32x256xf32> to vector<16x256xf32>
    %22 = arith.truncf %21 : vector<16x256xf32> to vector<16x256xbf16>
    %cst_12 = arith.constant dense<0.000000e+00> : vector<256x256xf32>
    %23 = tpu.matmul %20, %17, %cst_12 {dimension_numbers = #tpu.dot_dimension_numbers<[0], [0], [1], [1], [0, 1, 1, 1], [], []>} : vector<16x256xbf16>, vector<16x256xbf16>, vector<256x256xf32> -> vector<256x256xf32>
    %cst_13 = arith.constant dense<0xFF800000> : vector<256xf32>
    %24 = vector.multi_reduction <maximumf>, %23, %cst_13 [0] : vector<256x256xf32> to vector<256xf32>
    %25 = vector.shape_cast %24 : vector<256xf32> to vector<1x256xf32>
    %26 = vector.broadcast %25 : vector<1x256xf32> to vector<256x256xf32>
    %27 = arith.subf %23, %26 : vector<256x256xf32>
    %28 = math.exp %27 : vector<256x256xf32>
    %29 = arith.truncf %28 : vector<256x256xf32> to vector<256x256xbf16>
    %cst_14 = arith.constant dense<0.000000e+00> : vector<16x256xf32>
    %30 = tpu.matmul %22, %29, %cst_14 {dimension_numbers = #tpu.dot_dimension_numbers<[1], [0], [0], [1], [0, 0, 1, 1], [], []>} : vector<16x256xbf16>, vector<256x256xbf16>, vector<16x256xf32> -> vector<16x256xf32>
    %c0_15 = arith.constant 0 : index
    %c0_16 = arith.constant 0 : index
    %31 = memref.load %arg9[%c0_15, %c0_16] : memref<1x1xf32, #tpu.memory_space<smem>>
    %32 = vector.extract_strided_slice %30 {offsets = [12, 0], sizes = [1, 256], strides = [1, 1]} : vector<16x256xf32> to vector<1x256xf32>
    %33 = tpu.reciprocal %32 : vector<1x256xf32> -> vector<1x256xf32>
    %34 = vector.broadcast %31 : f32 to vector<1x256xf32>
    %35 = arith.mulf %34, %33 : vector<1x256xf32>
    %36 = vector.broadcast %35 : vector<1x256xf32> to vector<16x256xf32>
    %37 = arith.mulf %30, %36 : vector<16x256xf32>
    %38 = arith.truncf %37 : vector<16x256xf32> to vector<16x256xbf16>
    %c0_17 = arith.constant 0 : index
    %c0_18 = arith.constant 0 : index
    %39 = vector.load %arg8[%c0_17, %c0_18] : memref<32x16xbf16, #tpu.memory_space<vmem>>, vector<32x16xbf16>
    %cst_19 = arith.constant dense<0.000000e+00> : vector<32x256xf32>
    %40 = tpu.matmul %39, %38, %cst_19 {dimension_numbers = #tpu.dot_dimension_numbers<[1], [0], [0], [1], [0, 0, 1, 1], [], []>} : vector<32x16xbf16>, vector<16x256xbf16>, vector<32x256xf32> -> vector<32x256xf32>
    %41 = arith.addf %40, %18 : vector<32x256xf32>
    %42 = vector.extract_strided_slice %41 {offsets = [0, 0], sizes = [8, 256], strides = [1, 1]} : vector<32x256xf32> to vector<8x256xf32>
    %43 = arith.negf %42 : vector<8x256xf32>
    %44 = math.exp %43 : vector<8x256xf32>
    %cst_20 = arith.constant 1.000000e+00 : f32
    %45 = vector.broadcast %cst_20 : f32 to vector<8x256xf32>
    %46 = arith.addf %45, %44 : vector<8x256xf32>
    %47 = arith.divf %45, %46 : vector<8x256xf32>
    %48 = vector.extract_strided_slice %41 {offsets = [8, 0], sizes = [8, 256], strides = [1, 1]} : vector<32x256xf32> to vector<8x256xf32>
    %49 = arith.negf %48 : vector<8x256xf32>
    %50 = math.exp %49 : vector<8x256xf32>
    %cst_21 = arith.constant 1.000000e+00 : f32
    %51 = vector.broadcast %cst_21 : f32 to vector<8x256xf32>
    %52 = arith.addf %51, %50 : vector<8x256xf32>
    %53 = arith.divf %51, %52 : vector<8x256xf32>
    %54 = vector.extract_strided_slice %41 {offsets = [16, 0], sizes = [8, 256], strides = [1, 1]} : vector<32x256xf32> to vector<8x256xf32>
    %55 = arith.negf %54 : vector<8x256xf32>
    %56 = math.exp %55 : vector<8x256xf32>
    %cst_22 = arith.constant 1.000000e+00 : f32
    %57 = vector.broadcast %cst_22 : f32 to vector<8x256xf32>
    %58 = arith.addf %57, %56 : vector<8x256xf32>
    %59 = arith.divf %57, %58 : vector<8x256xf32>
    %60 = vector.extract_strided_slice %41 {offsets = [24, 0], sizes = [8, 256], strides = [1, 1]} : vector<32x256xf32> to vector<8x256xf32>
    %61 = math.tanh %60 : vector<8x256xf32>
    %c0_23 = arith.constant 0 : index
    %c0_24 = arith.constant 0 : index
    %c0_25 = arith.constant 0 : index
    %62 = vector.load %arg4[%c0_23, %c0_24, %c0_25] : memref<1x8x256xf32, #tpu.memory_space<vmem>>, vector<1x8x256xf32>
    %63 = vector.shape_cast %62 : vector<1x8x256xf32> to vector<8x256xf32>
    %64 = arith.mulf %53, %63 : vector<8x256xf32>
    %65 = arith.mulf %47, %61 : vector<8x256xf32>
    %66 = arith.addf %64, %65 : vector<8x256xf32>
    %67 = math.tanh %66 : vector<8x256xf32>
    %68 = arith.mulf %59, %67 : vector<8x256xf32>
    %c0_26 = arith.constant 0 : index
    %c0_27 = arith.constant 0 : index
    %c0_28 = arith.constant 0 : index
    %69 = vector.load %arg10[%c0_26, %c0_27, %c0_28] : memref<1x8x256xf32, #tpu.memory_space<vmem>>, vector<1x8x256xf32>
    %70 = vector.shape_cast %69 : vector<1x8x256xf32> to vector<8x256xf32>
    %71 = vector.shape_cast %68 : vector<8x256xf32> to vector<1x8x256xf32>
    tpu.vector_store %arg10[%c0_26, %c0_27, %c0_28], %71 {strides = array<i32>} : memref<1x8x256xf32, #tpu.memory_space<vmem>>, vector<1x8x256xf32>,
    %c0_29 = arith.constant 0 : index
    %c0_30 = arith.constant 0 : index
    %c0_31 = arith.constant 0 : index
    %72 = vector.load %arg11[%c0_29, %c0_30, %c0_31] : memref<1x8x256xf32, #tpu.memory_space<vmem>>, vector<1x8x256xf32>
    %73 = vector.shape_cast %72 : vector<1x8x256xf32> to vector<8x256xf32>
    %74 = vector.shape_cast %66 : vector<8x256xf32> to vector<1x8x256xf32>
    tpu.vector_store %arg11[%c0_29, %c0_30, %c0_31], %74 {strides = array<i32>} : memref<1x8x256xf32, #tpu.memory_space<vmem>>, vector<1x8x256xf32>,
    return
  }
  func.func @transform_0(%arg0: i32, %arg1: i32) -> (i32, i32, i32) {
    %c0_i32 = arith.constant 0 : i32
    %c0_i32_0 = arith.constant 0 : i32
    %c0_i32_1 = arith.constant 0 : i32
    return %arg0, %c0_i32, %c0_i32_0 : i32, i32, i32
  }
  func.func @transform_1(%arg0: i32, %arg1: i32) -> (i32, i32, i32) {
    %c0_i32 = arith.constant 0 : i32
    %c0_i32_0 = arith.constant 0 : i32
    %c0_i32_1 = arith.constant 0 : i32
    return %arg0, %c0_i32, %c0_i32_0 : i32, i32, i32
  }
  func.func @transform_2(%arg0: i32, %arg1: i32) -> (i32, i32, i32) {
    %c0_i32 = arith.constant 0 : i32
    %c0_i32_0 = arith.constant 0 : i32
    return %arg0, %c0_i32, %arg1 : i32, i32, i32
  }
  func.func @transform_3(%arg0: i32, %arg1: i32) -> (i32, i32) {
    %c0_i32 = arith.constant 0 : i32
    %c0_i32_0 = arith.constant 0 : i32
    %c0_i32_1 = arith.constant 0 : i32
    return %c0_i32, %c0_i32_0 : i32, i32
  }
  func.func @transform_4(%arg0: i32, %arg1: i32) -> (i32, i32) {
    %c0_i32 = arith.constant 0 : i32
    %c0_i32_0 = arith.constant 0 : i32
    %c0_i32_1 = arith.constant 0 : i32
    return %c0_i32, %c0_i32_0 : i32, i32
  }
  func.func @transform_5(%arg0: i32, %arg1: i32) -> (i32, i32) {
    %c0_i32 = arith.constant 0 : i32
    %c0_i32_0 = arith.constant 0 : i32
    %c0_i32_1 = arith.constant 0 : i32
    return %c0_i32, %c0_i32_0 : i32, i32
  }
  func.func @transform_6(%arg0: i32, %arg1: i32) -> (i32, i32) {
    %c0_i32 = arith.constant 0 : i32
    %c0_i32_0 = arith.constant 0 : i32
    %c0_i32_1 = arith.constant 0 : i32
    return %c0_i32, %c0_i32_0 : i32, i32
  }
  func.func @transform_7(%arg0: i32, %arg1: i32) -> (i32, i32) {
    %c0_i32 = arith.constant 0 : i32
    %c0_i32_0 = arith.constant 0 : i32
    %c0_i32_1 = arith.constant 0 : i32
    return %c0_i32, %c0_i32_0 : i32, i32
  }
  func.func @transform_8(%arg0: i32, %arg1: i32) -> (i32, i32, i32) {
    %c0_i32 = arith.constant 0 : i32
    %c0_i32_0 = arith.constant 0 : i32
    return %arg0, %c0_i32, %arg1 : i32, i32, i32
  }
  func.func @transform_9(%arg0: i32, %arg1: i32) -> (i32, i32, i32) {
    %c0_i32 = arith.constant 0 : i32
    %c0_i32_0 = arith.constant 0 : i32
    return %arg0, %c0_i32, %arg1 : i32, i32, i32
  }
}

</mosaic_0001>

<llo_original>
// kernel: tpu_custom_call.1
$region0: #{tpu_custom_call.1}
  #allocation0 [shape = 'u32[]', space=smem, size = 0x4, offset = 0x4, fixed_abs, tag = 'smem constant byte address 0x4 - core index']
  #allocation1 [shape = 'u32[144,128]{1,0:T(1,128)}', space=vmem, size = 0x12000, scoped, tag = 'internal scratch']
  #allocation2 [shape = 'f32[1,1]{1,0:T(1,128)S(6)}', space=smem, size = 0x200, scoped, tag = 'scoped memory for tpu_custom_call.1']
  %s0 = inlined_call_operand.vmem [shape: f32[2,4,256], index: 0, kind: input, shape index: {}]
  %s1 = inlined_call_operand.vmem [shape: f32[2,8,256], index: 1, kind: input, shape index: {}]
  %s2 = inlined_call_operand.vmem [shape: f32[2,8,256], index: 2, kind: input, shape index: {}]
  %s3 = inlined_call_operand.vmem [shape: bf16[80,4], index: 3, kind: input, shape index: {}]
  %s4 = inlined_call_operand.vmem [shape: bf16[80,8], index: 4, kind: input, shape index: {}]
  %s5 = inlined_call_operand.vmem [shape: f32[80,1], index: 5, kind: input, shape index: {}]
  %s6 = inlined_call_operand.vmem [shape: bf16[32,16], index: 6, kind: input, shape index: {}]
  %s7 = inlined_call_operand.<no memory space> [shape: f32[1,1], index: 7, kind: input, shape index: {}]
  %s8 = inlined_call_operand.hbm [shape: f32[2,8,256], index: 8, kind: output, shape index: {0}]
  %s9 = inlined_call_operand.hbm [shape: f32[2,8,256], index: 9, kind: output, shape index: {1}]
  %10 = xla_tuple %s8, %s9
  %s11 = sld [smem:[#allocation0]]
  $region73: #{tpu_custom_call.1} parent=0
    _
  %s13 = ssub.s32 1, %s11
  %s14 = scalar_select 0, %s13, %s11
  %15 = sst [smem:[#allocation2]] %s7
  $region1: #{tpu_custom_call.1} parent=0
    #allocation3 [shape = 'u8[16384]{0}', space=vmem, size = 0x4000, scoped, tag = 'output window, operand 0']
    #allocation4 [shape = 's32[2]{0}', space=sflag, size = 0x8, scoped, tag = 'scoped memory for tpu_custom_call.1']
    #allocation5 [shape = 'u8[16384]{0}', space=vmem, size = 0x4000, scoped, tag = 'output window, operand 1']
    #allocation6 [shape = 's32[2]{0}', space=sflag, size = 0x8, scoped, tag = 'scoped memory for tpu_custom_call.1']
    %16 = vsyncpa [#allocation4], 0
    %s17 = scalar_lea.sflag [#allocation4], 1
    %18 = vsyncpa %s17, 0
    %19 = vsyncpa [#allocation6], 0
    %s20 = scalar_lea.sflag [#allocation6], 1
    %21 = vsyncpa %s20, 0
    loop: start=0, step=1, limit=4
    $region2: #{tpu_custom_call.1} parent=1 // loop_pre_header
      _
    $region3: #{tpu_custom_call.1} parent=1 // loop_header
      %s23 = sphi 0, %s27
      %p24 = scmp.ge.s32.totalorder %s23, 4
      %s30 = sphi 0, %s42
      %s31 = sphi 0, %s38
      %s32 = sphi 0, %s30
      %s33 = sphi 0, %s31
      %s34 = sphi 0, %s32
      %s35 = sphi 0, %s33
      %s45 = sphi 0, %s47
      %s48 = sphi 0, %s45
      %s49 = sphi 0, %s48
      %s65 = sphi 0, %s49
      %s71 = sphi 0, %s73
      %s74 = sphi 0, %s71
      %s75 = sphi 0, %s74
      %s91 = sphi 0, %s75
      %s99 = sphi 0, %s101
      %s102 = sphi 0, %s99
      %s103 = sphi 0, %s102
      %s119 = sphi 0, %s103
      %s123 = sphi 0, %s123
      %s125 = sphi 0, %s123
      %s126 = sphi 0, %s125
      %s140 = sphi 0, %s126
      %s144 = sphi 0, %s144
      %s146 = sphi 0, %s144
      %s147 = sphi 0, %s146
      %s161 = sphi 0, %s147
      %s165 = sphi 0, %s165
      %s167 = sphi 0, %s165
      %s168 = sphi 0, %s167
      %s182 = sphi 0, %s168
      %s186 = sphi 0, %s186
      %s188 = sphi 0, %s186
      %s189 = sphi 0, %s188
      %s203 = sphi 0, %s189
      %s207 = sphi 0, %s207
      %s209 = sphi 0, %s207
      %s210 = sphi 0, %s209
      %s224 = sphi 0, %s210
      %s232 = sphi 0, %s234
      %s235 = sphi 0, %s232
      %s236 = sphi 0, %s235
      %s252 = sphi 0, %s236
      %s260 = sphi 0, %s262
      %s263 = sphi 0, %s260
      %s264 = sphi 0, %s263
      %s280 = sphi 0, %s264
    $region4: #{tpu_custom_call.1} parent=1 // loop_header_branch
      %26 = sbr.rel (%p24) target = $region8
    $region5: #{tpu_custom_call.1} parent=1 // loop_body
      %s28 = ssub.s32 %s23, 1
      %s29 = ssub.s32 %s23, 2
      %s36 = sadd.s32 1, %s31
      %p37 = scmp.ge.s32.totalorder %s36, 1
      %s38 = scalar_select %p37, 0, %s36
      %s39 = sadd.s32 1, %s30
      %s40 = scalar_select %p37, %s39, %s30
      %p41 = scmp.ge.s32.totalorder %s40, 2
      %s42 = scalar_select %p41, 0, %s40
      %s43 = ssub.s32 %s30, %s42
      %p44 = scmp.eq.s32.totalorder %s43, 0
      %s46 = sadd.s32 %s45, 1
      %s47 = scalar_select %p44, %s45, %s46
      %p50 = pneg %p44
      %p51 = scmp.eq.s32.totalorder %s23, 1
      %p52 = por %p50, %p51
      %p53 = scmp.ne.s32.totalorder %s45, %s48
      %p54 = scmp.eq.s32.totalorder %s23, 0
      %p55 = por %p53, %p54
      %p56 = scmp.ne.s32.totalorder %s45, %s48
      %p57 = scmp.eq.s32.totalorder %s28, 1
      %p58 = por %p56, %p57
      %p59 = scmp.ne.s32.totalorder %s48, %s49
      %p60 = scmp.eq.s32.totalorder %s28, 0
      %p61 = por %p59, %p60
      %p62 = scmp.ne.s32.totalorder %s48, %s49
      %p63 = scmp.eq.s32.totalorder %s29, 1
      %p64 = por %p62, %p63
      %p66 = scmp.ne.s32.totalorder %s49, %s65
      %p67 = scmp.eq.s32.totalorder %s29, 0
      %p68 = por %p66, %p67
      %s69 = ssub.s32 %s30, %s42
      %p70 = scmp.eq.s32.totalorder %s69, 0
      %s72 = sadd.s32 %s71, 1
      %s73 = scalar_select %p70, %s71, %s72
      %p76 = pneg %p70
      %p77 = scmp.eq.s32.totalorder %s23, 1
      %p78 = por %p76, %p77
      %p79 = scmp.ne.s32.totalorder %s71, %s74
      %p80 = scmp.eq.s32.totalorder %s23, 0
      %p81 = por %p79, %p80
      %p82 = scmp.ne.s32.totalorder %s71, %s74
      %p83 = scmp.eq.s32.totalorder %s28, 1
      %p84 = por %p82, %p83
      %p85 = scmp.ne.s32.totalorder %s74, %s75
      %p86 = scmp.eq.s32.totalorder %s28, 0
      %p87 = por %p85, %p86
      %p88 = scmp.ne.s32.totalorder %s74, %s75
      %p89 = scmp.eq.s32.totalorder %s29, 1
      %p90 = por %p88, %p89
      %p92 = scmp.ne.s32.totalorder %s75, %s91
      %p93 = scmp.eq.s32.totalorder %s29, 0
      %p94 = por %p92, %p93
      %s95 = ssub.s32 %s30, %s42
      %s96 = ssub.s32 %s31, %s38
      %s97 = sor.u32 %s95, %s96
      %p98 = scmp.eq.s32.totalorder %s97, 0
      %s100 = sadd.s32 %s99, 1
      %s101 = scalar_select %p98, %s99, %s100
      %p104 = pneg %p98
      %p105 = scmp.eq.s32.totalorder %s23, 1
      %p106 = por %p104, %p105
      %p107 = scmp.ne.s32.totalorder %s99, %s102
      %p108 = scmp.eq.s32.totalorder %s23, 0
      %p109 = por %p107, %p108
      %p110 = scmp.ne.s32.totalorder %s99, %s102
      %p111 = scmp.eq.s32.totalorder %s28, 1
      %p112 = por %p110, %p111
      %p113 = scmp.ne.s32.totalorder %s102, %s103
      %p114 = scmp.eq.s32.totalorder %s28, 0
      %p115 = por %p113, %p114
      %p116 = scmp.ne.s32.totalorder %s102, %s103
      %p117 = scmp.eq.s32.totalorder %s29, 1
      %p118 = por %p116, %p117
      %p120 = scmp.ne.s32.totalorder %s103, %s119
      %p121 = scmp.eq.s32.totalorder %s29, 0
      %p122 = por %p120, %p121
      %s124 = sadd.s32 %s123, 1
      %p127 = scmp.eq.s32.totalorder %s23, 1
      %p128 = scmp.ne.s32.totalorder %s123, %s125
      %p129 = scmp.eq.s32.totalorder %s23, 0
      %p130 = por %p128, %p129
      %p131 = scmp.ne.s32.totalorder %s123, %s125
      %p132 = scmp.eq.s32.totalorder %s28, 1
      %p133 = por %p131, %p132
      %p134 = scmp.ne.s32.totalorder %s125, %s126
      %p135 = scmp.eq.s32.totalorder %s28, 0
      %p136 = por %p134, %p135
      %p137 = scmp.ne.s32.totalorder %s125, %s126
      %p138 = scmp.eq.s32.totalorder %s29, 1
      %p139 = por %p137, %p138
      %p141 = scmp.ne.s32.totalorder %s126, %s140
      %p142 = scmp.eq.s32.totalorder %s29, 0
      %p143 = por %p141, %p142
      %s145 = sadd.s32 %s144, 1
      %p148 = scmp.eq.s32.totalorder %s23, 1
      %p149 = scmp.ne.s32.totalorder %s144, %s146
      %p150 = scmp.eq.s32.totalorder %s23, 0
      %p151 = por %p149, %p150
      %p152 = scmp.ne.s32.totalorder %s144, %s146
      %p153 = scmp.eq.s32.totalorder %s28, 1
      %p154 = por %p152, %p153
      %p155 = scmp.ne.s32.totalorder %s146, %s147
      %p156 = scmp.eq.s32.totalorder %s28, 0
      %p157 = por %p155, %p156
      %p158 = scmp.ne.s32.totalorder %s146, %s147
      %p159 = scmp.eq.s32.totalorder %s29, 1
      %p160 = por %p158, %p159
      %p162 = scmp.ne.s32.totalorder %s147, %s161
      %p163 = scmp.eq.s32.totalorder %s29, 0
      %p164 = por %p162, %p163
      %s166 = sadd.s32 %s165, 1
      %p169 = scmp.eq.s32.totalorder %s23, 1
      %p170 = scmp.ne.s32.totalorder %s165, %s167
      %p171 = scmp.eq.s32.totalorder %s23, 0
      %p172 = por %p170, %p171
      %p173 = scmp.ne.s32.totalorder %s165, %s167
      %p174 = scmp.eq.s32.totalorder %s28, 1
      %p175 = por %p173, %p174
      %p176 = scmp.ne.s32.totalorder %s167, %s168
      %p177 = scmp.eq.s32.totalorder %s28, 0
      %p178 = por %p176, %p177
      %p179 = scmp.ne.s32.totalorder %s167, %s168
      %p180 = scmp.eq.s32.totalorder %s29, 1
      %p181 = por %p179, %p180
      %p183 = scmp.ne.s32.totalorder %s168, %s182
      %p184 = scmp.eq.s32.totalorder %s29, 0
      %p185 = por %p183, %p184
      %s187 = sadd.s32 %s186, 1
      %p190 = scmp.eq.s32.totalorder %s23, 1
      %p191 = scmp.ne.s32.totalorder %s186, %s188
      %p192 = scmp.eq.s32.totalorder %s23, 0
      %p193 = por %p191, %p192
      %p194 = scmp.ne.s32.totalorder %s186, %s188
      %p195 = scmp.eq.s32.totalorder %s28, 1
      %p196 = por %p194, %p195
      %p197 = scmp.ne.s32.totalorder %s188, %s189
      %p198 = scmp.eq.s32.totalorder %s28, 0
      %p199 = por %p197, %p198
      %p200 = scmp.ne.s32.totalorder %s188, %s189
      %p201 = scmp.eq.s32.totalorder %s29, 1
      %p202 = por %p200, %p201
      %p204 = scmp.ne.s32.totalorder %s189, %s203
      %p205 = scmp.eq.s32.totalorder %s29, 0
      %p206 = por %p204, %p205
      %s208 = sadd.s32 %s207, 1
      %p211 = scmp.eq.s32.totalorder %s23, 1
      %p212 = scmp.ne.s32.totalorder %s207, %s209
      %p213 = scmp.eq.s32.totalorder %s23, 0
      %p214 = por %p212, %p213
      %p215 = scmp.ne.s32.totalorder %s207, %s209
      %p216 = scmp.eq.s32.totalorder %s28, 1
      %p217 = por %p215, %p216
      %p218 = scmp.ne.s32.totalorder %s209, %s210
      %p219 = scmp.eq.s32.totalorder %s28, 0
      %p220 = por %p218, %p219
      %p221 = scmp.ne.s32.totalorder %s209, %s210
      %p222 = scmp.eq.s32.totalorder %s29, 1
      %p223 = por %p221, %p222
      %p225 = scmp.ne.s32.totalorder %s210, %s224
      %p226 = scmp.eq.s32.totalorder %s29, 0
      %p227 = por %p225, %p226
      %s228 = ssub.s32 %s30, %s42
      %s229 = ssub.s32 %s31, %s38
      %s230 = sor.u32 %s228, %s229
      %p231 = scmp.eq.s32.totalorder %s230, 0
      %s233 = sadd.s32 %s232, 1
      %s234 = scalar_select %p231, %s232, %s233
      %p237 = pneg %p231
      %p238 = scmp.eq.s32.totalorder %s23, 1
      %p239 = por %p237, %p238
      %p240 = scmp.ne.s32.totalorder %s232, %s235
      %p241 = scmp.eq.s32.totalorder %s23, 0
      %p242 = por %p240, %p241
      %p243 = scmp.ne.s32.totalorder %s232, %s235
      %p244 = scmp.eq.s32.totalorder %s28, 1
      %p245 = por %p243, %p244
      %p246 = scmp.ne.s32.totalorder %s235, %s236
      %p247 = scmp.eq.s32.totalorder %s28, 0
      %p248 = por %p246, %p247
      %p249 = scmp.ne.s32.totalorder %s235, %s236
      %p250 = scmp.eq.s32.totalorder %s29, 1
      %p251 = por %p249, %p250
      %p253 = scmp.ne.s32.totalorder %s236, %s252
      %p254 = scmp.eq.s32.totalorder %s29, 0
      %p255 = por %p253, %p254
      %s256 = ssub.s32 %s30, %s42
      %s257 = ssub.s32 %s31, %s38
      %s258 = sor.u32 %s256, %s257
      %p259 = scmp.eq.s32.totalorder %s258, 0
      %s261 = sadd.s32 %s260, 1
      %s262 = scalar_select %p259, %s260, %s261
      %p265 = pneg %p259
      %p266 = scmp.eq.s32.totalorder %s23, 1
      %p267 = por %p265, %p266
      %p268 = scmp.ne.s32.totalorder %s260, %s263
      %p269 = scmp.eq.s32.totalorder %s23, 0
      %p270 = por %p268, %p269
      %p271 = scmp.ne.s32.totalorder %s260, %s263
      %p272 = scmp.eq.s32.totalorder %s28, 1
      %p273 = por %p271, %p272
      %p274 = scmp.ne.s32.totalorder %s263, %s264
      %p275 = scmp.eq.s32.totalorder %s28, 0
      %p276 = por %p274, %p275
      %p277 = scmp.ne.s32.totalorder %s263, %s264
      %p278 = scmp.eq.s32.totalorder %s29, 1
      %p279 = por %p277, %p278
      %p281 = scmp.ne.s32.totalorder %s264, %s280
      %p282 = scmp.eq.s32.totalorder %s29, 0
      %p283 = por %p281, %p282
      %p284 = scmp.le.s32.totalorder 1, %s23
      %p285 = scmp.lt.s32.totalorder %s23, 3
      %p286 = pnand %p284, %p285
      %p287 = pneg %p286
      // Predicated region
      $region9: #{tpu_custom_call.1} parent=5 // pred_check
        _
      $region10: #{tpu_custom_call.1} parent=5 // pred_check_branch
        %289 = sbr.rel (%p286) target = $region12
      $region11: #{tpu_custom_call.1} parent=5 // pred_region
        %s290 = ssub.s32 %s23, 1
        // Predicated region
        $region13: #{tpu_custom_call.1} parent=11 // pred_check
          %p291 = pneg %p136
        $region14: #{tpu_custom_call.1} parent=11 // pred_check_branch
          %293 = sbr.rel (%p291) target = $region16
        $region15: #{tpu_custom_call.1} parent=11 // pred_region
          _
        $region16: #{tpu_custom_call.1} parent=11 // pred_fallthru
          _
        // Predicated region
        $region17: #{tpu_custom_call.1} parent=11 // pred_check
          %p294 = pneg %p157
        $region18: #{tpu_custom_call.1} parent=11 // pred_check_branch
          %296 = sbr.rel (%p294) target = $region20
        $region19: #{tpu_custom_call.1} parent=11 // pred_region
          _
        $region20: #{tpu_custom_call.1} parent=11 // pred_fallthru
          _
        // Predicated region
        $region21: #{tpu_custom_call.1} parent=11 // pred_check
          %p297 = pneg %p178
        $region22: #{tpu_custom_call.1} parent=11 // pred_check_branch
          %299 = sbr.rel (%p297) target = $region24
        $region23: #{tpu_custom_call.1} parent=11 // pred_region
          _
        $region24: #{tpu_custom_call.1} parent=11 // pred_fallthru
          _
        // Predicated region
        $region25: #{tpu_custom_call.1} parent=11 // pred_check
          %p300 = pneg %p199
        $region26: #{tpu_custom_call.1} parent=11 // pred_check_branch
          %302 = sbr.rel (%p300) target = $region28
        $region27: #{tpu_custom_call.1} parent=11 // pred_region
          _
        $region28: #{tpu_custom_call.1} parent=11 // pred_fallthru
          _
        // Predicated region
        $region29: #{tpu_custom_call.1} parent=11 // pred_check
          %p303 = pneg %p220
        $region30: #{tpu_custom_call.1} parent=11 // pred_check_branch
          %305 = sbr.rel (%p303) target = $region32
        $region31: #{tpu_custom_call.1} parent=11 // pred_region
          _
        $region32: #{tpu_custom_call.1} parent=11 // pred_fallthru
          _
      $region12: #{tpu_custom_call.1} parent=5 // pred_fallthru
        _
      %p306 = scmp.lt.s32.totalorder %s23, 2
      // Predicated region
      $region33: #{tpu_custom_call.1} parent=5 // pred_check
        %p307 = pneg %p306
      $region34: #{tpu_custom_call.1} parent=5 // pred_check_branch
        %309 = sbr.rel (%p307) target = $region36
      $region35: #{tpu_custom_call.1} parent=5 // pred_region
        // Predicated region
        $region37: #{tpu_custom_call.1} parent=35 // pred_check
          %p310 = pneg %p55
        $region38: #{tpu_custom_call.1} parent=35 // pred_check_branch
          %312 = sbr.rel (%p310) target = $region40
        $region39: #{tpu_custom_call.1} parent=35 // pred_region
          %p313 = scmp.lt.s32.totalorder %s30, 1
          %s314 = scalar_select %p313, %s30, 1
          %s315 = smul.addr %s314, 2
          %s316 = smul.addr %s315, 4
          %s317 = scalar_lea.vmem %s0, %s316
        $region40: #{tpu_custom_call.1} parent=35 // pred_fallthru
          _
        // Predicated region
        $region41: #{tpu_custom_call.1} parent=35 // pred_check
          %p318 = pneg %p81
        $region42: #{tpu_custom_call.1} parent=35 // pred_check_branch
          %320 = sbr.rel (%p318) target = $region44
        $region43: #{tpu_custom_call.1} parent=35 // pred_region
          %p321 = scmp.lt.s32.totalorder %s30, 1
          %s322 = scalar_select %p321, %s30, 1
          %s323 = smul.addr %s322, 2
          %s324 = smul.addr %s323, 8
          %s325 = scalar_lea.vmem %s1, %s324
        $region44: #{tpu_custom_call.1} parent=35 // pred_fallthru
          _
        // Predicated region
        $region45: #{tpu_custom_call.1} parent=35 // pred_check
          %p326 = pneg %p109
        $region46: #{tpu_custom_call.1} parent=35 // pred_check_branch
          %328 = sbr.rel (%p326) target = $region48
        $region47: #{tpu_custom_call.1} parent=35 // pred_region
          %s329 = smul.u32 2, %s31
          %p330 = scmp.lt.s32.totalorder %s30, 1
          %s331 = scalar_select %p330, %s30, 1
          %p332 = scmp.lt.s32.totalorder %s329, 1
          %s333 = scalar_select %p332, %s329, 1
          %s334 = smul.addr %s331, 2
          %s335 = sadd.s32 %s333, %s334
          %s336 = smul.addr %s335, 8
          %s337 = scalar_lea.vmem %s2, %s336
          %s338 = smul.u32 2, %s31
        $region48: #{tpu_custom_call.1} parent=35 // pred_fallthru
          _
      $region36: #{tpu_custom_call.1} parent=5 // pred_fallthru
        _
      %p339 = scmp.le.s32.totalorder 1, %s23
      %p340 = scmp.lt.s32.totalorder %s23, 3
      %p341 = pnand %p339, %p340
      %p342 = pneg %p341
      // Predicated region
      $region49: #{tpu_custom_call.1} parent=5 // pred_check
        _
      $region50: #{tpu_custom_call.1} parent=5 // pred_check_branch
        %344 = sbr.rel (%p341) target = $region52
      $region51: #{tpu_custom_call.1} parent=5 // pred_region
        %s345 = ssub.s32 %s23, 1
        %p346 = scmp.lt.s32.totalorder %s32, 1
        %s347 = scalar_select %p346, %s32, 1
        %s348 = smul.addr %s347, 2
        %s349 = smul.addr %s348, 4
        %s350 = scalar_lea.vmem %s0, %s349
        %p351 = pneg %p61
        %p352 = pneg %p58
        %p353 = scmp.lt.s32.totalorder %s32, 1
        %s354 = scalar_select %p353, %s32, 1
        %s355 = smul.addr %s354, 2
        %s356 = smul.addr %s355, 8
        %s357 = scalar_lea.vmem %s1, %s356
        %p358 = pneg %p87
        %p359 = pneg %p84
        %s360 = smul.u32 2, %s33
        %p361 = scmp.lt.s32.totalorder %s32, 1
        %s362 = scalar_select %p361, %s32, 1
        %p363 = scmp.lt.s32.totalorder %s360, 1
        %s364 = scalar_select %p363, %s360, 1
        %s365 = smul.addr %s362, 2
        %s366 = sadd.s32 %s364, %s365
        %s367 = smul.addr %s366, 8
        %s368 = scalar_lea.vmem %s2, %s367
        %p369 = pneg %p115
        %p370 = pneg %p112
        %p371 = pneg %p136
        %p372 = pneg %p133
        %p373 = pneg %p157
        %p374 = pneg %p154
        %p375 = pneg %p178
        %p376 = pneg %p175
        %p377 = pneg %p199
        %p378 = pneg %p196
        %p379 = pneg %p220
        %p380 = pneg %p217
        %p381 = pneg %p248
        %p382 = pneg %p245
        %s383 = sand.u32 %s235, 1
        %s384 = scalar_lea.sflag [#allocation4], %s383
        %s385 = sand.u32 %s235, 1
        %s386 = smul.addr %s385, 16
        %s387 = scalar_lea.vmem [#allocation3], %s386
        %p388 = pneg %p276
        %p389 = pneg %p273
        %s390 = sand.u32 %s263, 1
        %s391 = scalar_lea.sflag [#allocation6], %s390
        %s392 = sand.u32 %s263, 1
        %s393 = smul.addr %s392, 16
        %s394 = scalar_lea.vmem [#allocation5], %s393
        %p395 = scmp.lt.s32.totalorder %s32, 1
        %s396 = scalar_select %p395, %s32, 1
        %s397 = smul.addr %s396, 2
        %s398 = smul.addr %s397, 4
        %s399 = scalar_lea.vmem %s0, %s398
        %p400 = scmp.lt.s32.totalorder %s32, 1
        %s401 = scalar_select %p400, %s32, 1
        %s402 = smul.addr %s401, 2
        %s403 = smul.addr %s402, 8
        %s404 = scalar_lea.vmem %s1, %s403
        %s405 = smul.u32 2, %s33
        %p406 = scmp.lt.s32.totalorder %s32, 1
        %s407 = scalar_select %p406, %s32, 1
        %p408 = scmp.lt.s32.totalorder %s405, 1
        %s409 = scalar_select %p408, %s405, 1
        %s410 = smul.addr %s407, 2
        %s411 = sadd.s32 %s409, %s410
        %s412 = smul.addr %s411, 8
        %s413 = scalar_lea.vmem %s2, %s412
        %s414 = smul.u32 2, %s33
        %s415 = smul.u32 2, %s33
        %s416 = smul.u32 2, %s33
        %v418 = vld [vmem:[%s399] sm:$0xff]
        %v420 = vcombine.high %v418, %v418
        %v422 = vpack.c.bf16 %v418, %v418
        %v423 = vpack.c.bf16 %v420, %v420
        %v424 = vld [vmem:[%s404] sm:$0xff]
        %v425 = vld [vmem:[%s404 + $0x8] sm:$0xff]
        %v426 = vpack.c.bf16 %v424, %v424
        %v427 = vpack.c.bf16 %v425, %v425
        %v428 = vld [vmem:[%s3] sm:$0xf]
        %v429 = vld [vmem:[%s3 + $0x4] sm:$0xf]
        %v430 = vld [vmem:[%s3 + $0x8] sm:$0xf]
        %v431 = vld [vmem:[%s3 + $0xc] sm:$0xf]
        %v432 = vld [vmem:[%s3 + $0x10] sm:$0xf]
        %v433 = vld [vmem:[%s3 + $0x14] sm:$0xf]
        %v434 = vld [vmem:[%s3 + $0x18] sm:$0xf]
        %v435 = vld [vmem:[%s3 + $0x1c] sm:$0xf]
        %v436 = vld [vmem:[%s3 + $0x20] sm:$0xf]
        %v437 = vld [vmem:[%s3 + $0x24] sm:$0xf]
        %v438 = vld [vmem:[%s4] sm:$0xf]
        %v439 = vld [vmem:[%s4 + $0x4] sm:$0xf]
        %v440 = vld [vmem:[%s4 + $0x8] sm:$0xf]
        %v441 = vld [vmem:[%s4 + $0xc] sm:$0xf]
        %v442 = vld [vmem:[%s4 + $0x10] sm:$0xf]
        %v443 = vld [vmem:[%s4 + $0x14] sm:$0xf]
        %v444 = vld [vmem:[%s4 + $0x18] sm:$0xf]
        %v445 = vld [vmem:[%s4 + $0x1c] sm:$0xf]
        %v446 = vld [vmem:[%s4 + $0x20] sm:$0xf]
        %v447 = vld [vmem:[%s4 + $0x24] sm:$0xf]
        %v458 = vunpack.c.l.b16 %v438
        %v459 = vunpack.c.l.b16 %v439
        %v460 = vunpack.c.l.b16 %v440
        %v461 = vunpack.c.l.b16 %v441
        %v462 = vunpack.c.l.b16 %v442
        %v463 = vunpack.c.l.b16 %v443
        %v464 = vunpack.c.l.b16 %v444
        %v465 = vunpack.c.l.b16 %v445
        %v466 = vunpack.c.l.b16 %v446
        %v467 = vunpack.c.l.b16 %v447
        %v468 = vpack.c.b16 %v459, %v458
        %v469 = vpack.c.b16 %v461, %v460
        %v470 = vpack.c.b16 %v463, %v462
        %v471 = vpack.c.b16 %v465, %v464
        %v472 = vpack.c.b16 %v467, %v466
        %vm473 = vcmask 64512
        %v475 = vsel %vm473, %v468, 0
        %v478 = vsel %vm473, %v469, 0
        %v481 = vsel %vm473, %v470, 0
        %v484 = vsel %vm473, %v471, 0
        %v487 = vsel %vm473, %v472, 0
        %vm489 = vcmask 1043456
        %v491 = vsel %vm489, %v426, 0
        %v494 = vsel %vm489, %v427, 0
        %496 = vmatprep.subr.bf16.mxu0 %v494
        %497 = vmatpush1.bf16.msra.mxu0 %v491
        %498 = vmatprep.subr.bf16.mxu0 0
        %499 = vmatpush1.bf16.msra.mxu0 0
        %500 = vmatprep.subr.bf16.mxu0 0
        %501 = vmatpush1.bf16.msra.mxu0 0
        %502 = vmatprep.subr.bf16.mxu0 0
        %503 = vmatpush1.bf16.msra.mxu0 0
        %504 = vmatprep.subr.bf16.mxu0 0
        %505 = vmatpush1.bf16.msra.mxu0 0
        %506 = vmatprep.subr.bf16.mxu0 0
        %507 = vmatpush1.bf16.msra.mxu0 0
        %508 = vmatprep.subr.bf16.mxu0 0
        %509 = vmatpush1.bf16.msra.mxu0 0
        %510 = vmatprep.subr.bf16.mxu0 0
        %511 = vmatpush1.bf16.msra.mxu0 0
        %512 = vmatprep.subr.bf16.mxu0 0
        %513 = vmatpush1.bf16.msra.mxu0 0
        %514 = vmatprep.subr.bf16.mxu0 0
        %515 = vmatpush1.bf16.msra.mxu0 0
        %516 = vmatprep.subr.bf16.mxu0 0
        %517 = vmatpush1.bf16.msra.mxu0 0
        %518 = vmatprep.subr.bf16.mxu0 0
        %519 = vmatpush1.bf16.msra.mxu0 0
        %520 = vmatprep.subr.bf16.mxu0 0
        %521 = vmatpush1.bf16.msra.mxu0 0
        %522 = vmatprep.subr.bf16.mxu0 0
        %523 = vmatpush1.bf16.msra.mxu0 0
        %524 = vmatprep.subr.bf16.mxu0 0
        %525 = vmatpush1.bf16.msra.mxu0 0
        %526 = vmatprep.subr.bf16.mxu0 0
        %527 = vmatpush1.bf16.msra.mxu0 0
        %528 = vmatprep.mubr.bf16.mxu0 0
        %529 = vmatmul.mubr.bf16.gmra.mrb[0].mxu0 %v475
        %v530 = vpop.f32.mrb[0].mxu0
        %v531 = vadd.f32 0.0, %v530
        %v532 = vpop.f32.mrb[0].mxu0
        %v533 = vadd.f32 0.0, %v532
        %v534 = vpop.f32.mrb[0].mxu0
        %v535 = vadd.f32 0.0, %v534
        %v536 = vpop.f32.mrb[0].mxu0
        %v537 = vadd.f32 0.0, %v536
        %538 = vmatprep.mubr.bf16.mxu0 0
        %539 = vmatmul.mubr.bf16.gmra.mrb[0].mxu0 %v478
        %v540 = vpop.f32.mrb[0].mxu0
        %v541 = vadd.f32 0.0, %v540
        %v542 = vpop.f32.mrb[0].mxu0
        %v543 = vadd.f32 0.0, %v542
        %v544 = vpop.f32.mrb[0].mxu0
        %v545 = vadd.f32 0.0, %v544
        %v546 = vpop.f32.mrb[0].mxu0
        %v547 = vadd.f32 0.0, %v546
        %548 = vmatprep.mubr.bf16.mxu0 0
        %549 = vmatmul.mubr.bf16.gmra.mrb[0].mxu0 %v481
        %v550 = vpop.f32.mrb[0].mxu0
        %v551 = vadd.f32 0.0, %v550
        %v552 = vpop.f32.mrb[0].mxu0
        %v553 = vadd.f32 0.0, %v552
        %v554 = vpop.f32.mrb[0].mxu0
        %v555 = vadd.f32 0.0, %v554
        %v556 = vpop.f32.mrb[0].mxu0
        %v557 = vadd.f32 0.0, %v556
        %558 = vmatprep.mubr.bf16.mxu0 0
        %559 = vmatmul.mubr.bf16.gmra.mrb[0].mxu0 %v484
        %v560 = vpop.f32.mrb[0].mxu0
        %v561 = vadd.f32 0.0, %v560
        %v562 = vpop.f32.mrb[0].mxu0
        %v563 = vadd.f32 0.0, %v562
        %v564 = vpop.f32.mrb[0].mxu0
        %v565 = vadd.f32 0.0, %v564
        %v566 = vpop.f32.mrb[0].mxu0
        %v567 = vadd.f32 0.0, %v566
        %568 = vmatprep.mubr.bf16.mxu0 0
        %569 = vmatmul.mubr.bf16.gmra.mrb[0].mxu0 %v487
        %v570 = vpop.f32.mrb[0].mxu0
        %v571 = vadd.f32 0.0, %v570
        %v572 = vpop.f32.mrb[0].mxu0
        %v573 = vadd.f32 0.0, %v572
        %v574 = vpop.f32.mrb[0].mxu0
        %v575 = vadd.f32 0.0, %v574
        %v576 = vpop.f32.mrb[0].mxu0
        %v577 = vadd.f32 0.0, %v576
        %578 = vdwg.mxu0
        %v589 = vunpack.c.l.b16 %v428
        %v590 = vunpack.c.l.b16 %v429
        %v591 = vunpack.c.l.b16 %v430
        %v592 = vunpack.c.l.b16 %v431
        %v593 = vunpack.c.l.b16 %v432
        %v594 = vunpack.c.l.b16 %v433
        %v595 = vunpack.c.l.b16 %v434
        %v596 = vunpack.c.l.b16 %v435
        %v597 = vunpack.c.l.b16 %v436
        %v598 = vunpack.c.l.b16 %v437
        %v599 = vpack.c.b16 %v590, %v589
        %v600 = vpack.c.b16 %v592, %v591
        %v601 = vpack.c.b16 %v594, %v593
        %v602 = vpack.c.b16 %v596, %v595
        %v603 = vpack.c.b16 %v598, %v597
        %vm604 = vcmask 31744
        %v606 = vsel %vm604, %v599, 0
        %v609 = vsel %vm604, %v600, 0
        %v612 = vsel %vm604, %v601, 0
        %v615 = vsel %vm604, %v602, 0
        %v618 = vsel %vm604, %v603, 0
        %vm620 = vcmask 1041408
        %v622 = vsel %vm620, %v422, 0
        %v625 = vsel %vm620, %v423, 0
        %627 = vmatprep.subr.bf16.mxu0 %v625
        %628 = vmatpush1.bf16.msra.mxu0 %v622
        %629 = vmatprep.subr.bf16.mxu0 0
        %630 = vmatpush1.bf16.msra.mxu0 0
        %631 = vmatprep.subr.bf16.mxu0 0
        %632 = vmatpush1.bf16.msra.mxu0 0
        %633 = vmatprep.subr.bf16.mxu0 0
        %634 = vmatpush1.bf16.msra.mxu0 0
        %635 = vmatprep.subr.bf16.mxu0 0
        %636 = vmatpush1.bf16.msra.mxu0 0
        %637 = vmatprep.subr.bf16.mxu0 0
        %638 = vmatpush1.bf16.msra.mxu0 0
        %639 = vmatprep.subr.bf16.mxu0 0
        %640 = vmatpush1.bf16.msra.mxu0 0
        %641 = vmatprep.subr.bf16.mxu0 0
        %642 = vmatpush1.bf16.msra.mxu0 0
        %643 = vmatprep.subr.bf16.mxu0 0
        %644 = vmatpush1.bf16.msra.mxu0 0
        %645 = vmatprep.subr.bf16.mxu0 0
        %646 = vmatpush1.bf16.msra.mxu0 0
        %647 = vmatprep.subr.bf16.mxu0 0
        %648 = vmatpush1.bf16.msra.mxu0 0
        %649 = vmatprep.subr.bf16.mxu0 0
        %650 = vmatpush1.bf16.msra.mxu0 0
        %651 = vmatprep.subr.bf16.mxu0 0
        %652 = vmatpush1.bf16.msra.mxu0 0
        %653 = vmatprep.subr.bf16.mxu0 0
        %654 = vmatpush1.bf16.msra.mxu0 0
        %655 = vmatprep.subr.bf16.mxu0 0
        %656 = vmatpush1.bf16.msra.mxu0 0
        %657 = vmatprep.subr.bf16.mxu0 0
        %658 = vmatpush1.bf16.msra.mxu0 0
        %659 = vmatprep.mubr.bf16.mxu0 0
        %660 = vmatmul.mubr.bf16.gmra.mrb[0].mxu0 %v606
        %v661 = vpop.f32.mrb[0].mxu0
        %v662 = vadd.f32 %v531, %v661
        %v663 = vpop.f32.mrb[0].mxu0
        %v664 = vadd.f32 %v533, %v663
        %v665 = vpop.f32.mrb[0].mxu0
        %v666 = vadd.f32 %v535, %v665
        %v667 = vpop.f32.mrb[0].mxu0
        %v668 = vadd.f32 %v537, %v667
        %669 = vmatprep.mubr.bf16.mxu0 0
        %670 = vmatmul.mubr.bf16.gmra.mrb[0].mxu0 %v609
        %v671 = vpop.f32.mrb[0].mxu0
        %v672 = vadd.f32 %v541, %v671
        %v673 = vpop.f32.mrb[0].mxu0
        %v674 = vadd.f32 %v543, %v673
        %v675 = vpop.f32.mrb[0].mxu0
        %v676 = vadd.f32 %v545, %v675
        %v677 = vpop.f32.mrb[0].mxu0
        %v678 = vadd.f32 %v547, %v677
        %679 = vmatprep.mubr.bf16.mxu0 0
        %680 = vmatmul.mubr.bf16.gmra.mrb[0].mxu0 %v612
        %v681 = vpop.f32.mrb[0].mxu0
        %v682 = vadd.f32 %v551, %v681
        %v683 = vpop.f32.mrb[0].mxu0
        %v684 = vadd.f32 %v553, %v683
        %v685 = vpop.f32.mrb[0].mxu0
        %v686 = vadd.f32 %v555, %v685
        %v687 = vpop.f32.mrb[0].mxu0
        %v688 = vadd.f32 %v557, %v687
        %689 = vmatprep.mubr.bf16.mxu0 0
        %690 = vmatmul.mubr.bf16.gmra.mrb[0].mxu0 %v615
        %v691 = vpop.f32.mrb[0].mxu0
        %v692 = vadd.f32 %v561, %v691
        %v693 = vpop.f32.mrb[0].mxu0
        %v694 = vadd.f32 %v563, %v693
        %v695 = vpop.f32.mrb[0].mxu0
        %v696 = vadd.f32 %v565, %v695
        %v697 = vpop.f32.mrb[0].mxu0
        %v698 = vadd.f32 %v567, %v697
        %699 = vmatprep.mubr.bf16.mxu0 0
        %700 = vmatmul.mubr.bf16.gmra.mrb[0].mxu0 %v618
        %v701 = vpop.f32.mrb[0].mxu0
        %v702 = vadd.f32 %v571, %v701
        %v703 = vpop.f32.mrb[0].mxu0
        %v704 = vadd.f32 %v573, %v703
        %v705 = vpop.f32.mrb[0].mxu0
        %v706 = vadd.f32 %v575, %v705
        %v707 = vpop.f32.mrb[0].mxu0
        %v708 = vadd.f32 %v577, %v707
        %709 = vdwg.mxu0
        %v710 = vld [vmem:[%s5] sm:$0xff]
        %v711 = vld [vmem:[%s5 + $0x8] sm:$0xff]
        %v712 = vld [vmem:[%s5 + $0x10] sm:$0xff]
        %v713 = vld [vmem:[%s5 + $0x18] sm:$0xff]
        %v714 = vld [vmem:[%s5 + $0x20] sm:$0xff]
        %v715 = vld [vmem:[%s5 + $0x28] sm:$0xff]
        %v716 = vld [vmem:[%s5 + $0x30] sm:$0xff]
        %v717 = vld [vmem:[%s5 + $0x38] sm:$0xff]
        %v718 = vld [vmem:[%s5 + $0x40] sm:$0xff]
        %v719 = vld [vmem:[%s5 + $0x48] sm:$0xff]
        %721 = vset.pattern.permute.xlu0 0
        %722 = vperm.xlu0 %721, %v710
        %v723 = vpop.permute.xlu0 %722
        %726 = vset.pattern.permute.xlu0 0
        %727 = vperm.xlu0 %726, %v711
        %v728 = vpop.permute.xlu0 %727
        %731 = vset.pattern.permute.xlu0 0
        %732 = vperm.xlu0 %731, %v712
        %v733 = vpop.permute.xlu0 %732
        %736 = vset.pattern.permute.xlu0 0
        %737 = vperm.xlu0 %736, %v713
        %v738 = vpop.permute.xlu0 %737
        %741 = vset.pattern.permute.xlu0 0
        %742 = vperm.xlu0 %741, %v714
        %v743 = vpop.permute.xlu0 %742
        %746 = vset.pattern.permute.xlu0 0
        %747 = vperm.xlu0 %746, %v715
        %v748 = vpop.permute.xlu0 %747
        %751 = vset.pattern.permute.xlu0 0
        %752 = vperm.xlu0 %751, %v716
        %v753 = vpop.permute.xlu0 %752
        %756 = vset.pattern.permute.xlu0 0
        %757 = vperm.xlu0 %756, %v717
        %v758 = vpop.permute.xlu0 %757
        %761 = vset.pattern.permute.xlu0 0
        %762 = vperm.xlu0 %761, %v718
        %v763 = vpop.permute.xlu0 %762
        %766 = vset.pattern.permute.xlu0 0
        %767 = vperm.xlu0 %766, %v719
        %v768 = vpop.permute.xlu0 %767
        %v770 = vadd.f32 %v662, %v723
        %v771 = vadd.f32 %v664, %v723
        %v772 = vadd.f32 %v666, %v728
        %v773 = vadd.f32 %v668, %v728
        %v774 = vadd.f32 %v672, %v733
        %v775 = vadd.f32 %v674, %v733
        %v776 = vadd.f32 %v676, %v738
        %v777 = vadd.f32 %v678, %v738
        %v778 = vadd.f32 %v682, %v743
        %v779 = vadd.f32 %v684, %v743
        %v780 = vadd.f32 %v686, %v748
        %v781 = vadd.f32 %v688, %v748
        %v782 = vadd.f32 %v692, %v753
        %v783 = vadd.f32 %v694, %v753
        %v784 = vadd.f32 %v696, %v758
        %v785 = vadd.f32 %v698, %v758
        %v786 = vadd.f32 %v702, %v763
        %v787 = vadd.f32 %v704, %v763
        %v788 = vadd.f32 %v706, %v768
        %v789 = vadd.f32 %v708, %v768
        %v790 = vpack.c.bf16 %v772, %v770
        %v791 = vpack.c.bf16 %v773, %v771
        %v792 = vpack.c.bf16 %v784, %v782
        %v793 = vpack.c.bf16 %v785, %v783
        %v794 = vpack.c.bf16 %v788, %v786
        %v795 = vpack.c.bf16 %v789, %v787
        %796 = vxpose.xlu0.c.b16.start [1/8] %v792, 128
        %797 = vxpose.xlu0.c.b16.cont [2/8] 0, 128
        %798 = vxpose.xlu0.c.b16.cont [3/8] 0, 128
        %799 = vxpose.xlu0.c.b16.cont [4/8] 0, 128
        %800 = vxpose.xlu0.c.b16.cont [5/8] 0, 128
        %801 = vxpose.xlu0.c.b16.cont [6/8] 0, 128
        %802 = vxpose.xlu0.c.b16.cont [7/8] 0, 128
        %803 = vxpose.xlu0.c.b16.end [8/8] 0, 128
        %v804 = vpop.trf.xlu0
        %v805 = vpop.trf.xlu0
        %v806 = vpop.trf.xlu0
        %v807 = vpop.trf.xlu0
        %v808 = vpop.trf.xlu0
        %v809 = vpop.trf.xlu0
        %v810 = vpop.trf.xlu0
        %v811 = vpop.trf.xlu0
        %812 = vxpose.xlu0.c.b16.start [1/8] %v793, 128
        %813 = vxpose.xlu0.c.b16.cont [2/8] 0, 128
        %814 = vxpose.xlu0.c.b16.cont [3/8] 0, 128
        %815 = vxpose.xlu0.c.b16.cont [4/8] 0, 128
        %816 = vxpose.xlu0.c.b16.cont [5/8] 0, 128
        %817 = vxpose.xlu0.c.b16.cont [6/8] 0, 128
        %818 = vxpose.xlu0.c.b16.cont [7/8] 0, 128
        %819 = vxpose.xlu0.c.b16.end [8/8] 0, 128
        %v820 = vpop.trf.xlu0
        %v821 = vpop.trf.xlu0
        %v822 = vpop.trf.xlu0
        %v823 = vpop.trf.xlu0
        %v824 = vpop.trf.xlu0
        %v825 = vpop.trf.xlu0
        %v826 = vpop.trf.xlu0
        %v827 = vpop.trf.xlu0
        %vm828 = vcmask 130048
        %v830 = vsel %vm828, %v804, 0
        %v833 = vsel %vm828, %v805, 0
        %v836 = vsel %vm828, %v806, 0
        %v839 = vsel %vm828, %v807, 0
        %v842 = vsel %vm828, %v808, 0
        %v845 = vsel %vm828, %v809, 0
        %v848 = vsel %vm828, %v810, 0
        %v851 = vsel %vm828, %v811, 0
        %v854 = vsel %vm828, %v820, 0
        %v857 = vsel %vm828, %v821, 0
        %v860 = vsel %vm828, %v822, 0
        %v863 = vsel %vm828, %v823, 0
        %v866 = vsel %vm828, %v824, 0
        %v869 = vsel %vm828, %v825, 0
        %v872 = vsel %vm828, %v826, 0
        %v875 = vsel %vm828, %v827, 0
        %877 = vmatprep.subr.bf16.mxu0 %v791
        %878 = vmatpush1.bf16.msra.mxu0 %v790
        %879 = vmatprep.subr.bf16.mxu0 0
        %880 = vmatpush1.bf16.msra.mxu0 0
        %881 = vmatprep.subr.bf16.mxu0 0
        %882 = vmatpush1.bf16.msra.mxu0 0
        %883 = vmatprep.subr.bf16.mxu0 0
        %884 = vmatpush1.bf16.msra.mxu0 0
        %885 = vmatprep.subr.bf16.mxu0 0
        %886 = vmatpush1.bf16.msra.mxu0 0
        %887 = vmatprep.subr.bf16.mxu0 0
        %888 = vmatpush1.bf16.msra.mxu0 0
        %889 = vmatprep.subr.bf16.mxu0 0
        %890 = vmatpush1.bf16.msra.mxu0 0
        %891 = vmatprep.subr.bf16.mxu0 0
        %892 = vmatpush1.bf16.msra.mxu0 0
        %893 = vmatprep.subr.bf16.mxu0 0
        %894 = vmatpush1.bf16.msra.mxu0 0
        %895 = vmatprep.subr.bf16.mxu0 0
        %896 = vmatpush1.bf16.msra.mxu0 0
        %897 = vmatprep.subr.bf16.mxu0 0
        %898 = vmatpush1.bf16.msra.mxu0 0
        %899 = vmatprep.subr.bf16.mxu0 0
        %900 = vmatpush1.bf16.msra.mxu0 0
        %901 = vmatprep.subr.bf16.mxu0 0
        %902 = vmatpush1.bf16.msra.mxu0 0
        %903 = vmatprep.subr.bf16.mxu0 0
        %904 = vmatpush1.bf16.msra.mxu0 0
        %905 = vmatprep.subr.bf16.mxu0 0
        %906 = vmatpush1.bf16.msra.mxu0 0
        %907 = vmatprep.subr.bf16.mxu0 0
        %908 = vmatpush1.bf16.msra.mxu0 0
        %909 = vmatprep.mubr.bf16.mxu0 0
        %910 = vmatmul.mubr.bf16.gmra.mrb[0].mxu0 %v830
        %v911 = vpop.f32.mrb[0].mxu0
        %v912 = vadd.f32 0.0, %v911
        %v913 = vpop.f32.mrb[0].mxu0
        %v914 = vadd.f32 0.0, %v913
        %v915 = vpop.f32.mrb[0].mxu0
        %v916 = vadd.f32 0.0, %v915
        %v917 = vpop.f32.mrb[0].mxu0
        %v918 = vadd.f32 0.0, %v917
        %919 = vmatprep.mubr.bf16.mxu0 0
        %920 = vmatmul.mubr.bf16.gmra.mrb[0].mxu0 %v833
        %v921 = vpop.f32.mrb[0].mxu0
        %v922 = vadd.f32 0.0, %v921
        %v923 = vpop.f32.mrb[0].mxu0
        %v924 = vadd.f32 0.0, %v923
        %v925 = vpop.f32.mrb[0].mxu0
        %v926 = vadd.f32 0.0, %v925
        %v927 = vpop.f32.mrb[0].mxu0
        %v928 = vadd.f32 0.0, %v927
        %929 = vmatprep.mubr.bf16.mxu0 0
        %930 = vmatmul.mubr.bf16.gmra.mrb[0].mxu0 %v836
        %v931 = vpop.f32.mrb[0].mxu0
        %v932 = vadd.f32 0.0, %v931
        %v933 = vpop.f32.mrb[0].mxu0
        %v934 = vadd.f32 0.0, %v933
        %v935 = vpop.f32.mrb[0].mxu0
        %v936 = vadd.f32 0.0, %v935
        %v937 = vpop.f32.mrb[0].mxu0
        %v938 = vadd.f32 0.0, %v937
        %939 = vmatprep.mubr.bf16.mxu0 0
        %940 = vmatmul.mubr.bf16.gmra.mrb[0].mxu0 %v839
        %v941 = vpop.f32.mrb[0].mxu0
        %v942 = vadd.f32 0.0, %v941
        %v943 = vpop.f32.mrb[0].mxu0
        %v944 = vadd.f32 0.0, %v943
        %v945 = vpop.f32.mrb[0].mxu0
        %v946 = vadd.f32 0.0, %v945
        %v947 = vpop.f32.mrb[0].mxu0
        %v948 = vadd.f32 0.0, %v947
        %949 = vmatprep.mubr.bf16.mxu0 0
        %950 = vmatmul.mubr.bf16.gmra.mrb[0].mxu0 %v842
        %v951 = vpop.f32.mrb[0].mxu0
        %v952 = vadd.f32 0.0, %v951
        %v953 = vpop.f32.mrb[0].mxu0
        %v954 = vadd.f32 0.0, %v953
        %v955 = vpop.f32.mrb[0].mxu0
        %v956 = vadd.f32 0.0, %v955
        %v957 = vpop.f32.mrb[0].mxu0
        %v958 = vadd.f32 0.0, %v957
        %959 = vmatprep.mubr.bf16.mxu0 0
        %960 = vmatmul.mubr.bf16.gmra.mrb[0].mxu0 %v845
        %v961 = vpop.f32.mrb[0].mxu0
        %v962 = vadd.f32 0.0, %v961
        %v963 = vpop.f32.mrb[0].mxu0
        %v964 = vadd.f32 0.0, %v963
        %v965 = vpop.f32.mrb[0].mxu0
        %v966 = vadd.f32 0.0, %v965
        %v967 = vpop.f32.mrb[0].mxu0
        %v968 = vadd.f32 0.0, %v967
        %969 = vmatprep.mubr.bf16.mxu0 0
        %970 = vmatmul.mubr.bf16.gmra.mrb[0].mxu0 %v848
        %v971 = vpop.f32.mrb[0].mxu0
        %v972 = vadd.f32 0.0, %v971
        %v973 = vpop.f32.mrb[0].mxu0
        %v974 = vadd.f32 0.0, %v973
        %v975 = vpop.f32.mrb[0].mxu0
        %v976 = vadd.f32 0.0, %v975
        %v977 = vpop.f32.mrb[0].mxu0
        %v978 = vadd.f32 0.0, %v977
        %979 = vmatprep.mubr.bf16.mxu0 0
        %980 = vmatmul.mubr.bf16.gmra.mrb[0].mxu0 %v851
        %v981 = vpop.f32.mrb[0].mxu0
        %v982 = vadd.f32 0.0, %v981
        %v983 = vpop.f32.mrb[0].mxu0
        %v984 = vadd.f32 0.0, %v983
        %v985 = vpop.f32.mrb[0].mxu0
        %v986 = vadd.f32 0.0, %v985
        %v987 = vpop.f32.mrb[0].mxu0
        %v988 = vadd.f32 0.0, %v987
        %989 = vmatprep.mubr.bf16.mxu0 0
        %990 = vmatmul.mubr.bf16.gmra.mrb[0].mxu0 %v854
        %v991 = vpop.f32.mrb[0].mxu0
        %v992 = vadd.f32 0.0, %v991
        %v993 = vpop.f32.mrb[0].mxu0
        %v994 = vadd.f32 0.0, %v993
        %v995 = vpop.f32.mrb[0].mxu0
        %v996 = vadd.f32 0.0, %v995
        %v997 = vpop.f32.mrb[0].mxu0
        %v998 = vadd.f32 0.0, %v997
        %999 = vmatprep.mubr.bf16.mxu0 0
        %1000 = vmatmul.mubr.bf16.gmra.mrb[0].mxu0 %v857
        %v1001 = vpop.f32.mrb[0].mxu0
        %v1002 = vadd.f32 0.0, %v1001
        %v1003 = vpop.f32.mrb[0].mxu0
        %v1004 = vadd.f32 0.0, %v1003
        %v1005 = vpop.f32.mrb[0].mxu0
        %v1006 = vadd.f32 0.0, %v1005
        %v1007 = vpop.f32.mrb[0].mxu0
        %v1008 = vadd.f32 0.0, %v1007
        %1009 = vmatprep.mubr.bf16.mxu0 0
        %1010 = vmatmul.mubr.bf16.gmra.mrb[0].mxu0 %v860
        %v1011 = vpop.f32.mrb[0].mxu0
        %v1012 = vadd.f32 0.0, %v1011
        %v1013 = vpop.f32.mrb[0].mxu0
        %v1014 = vadd.f32 0.0, %v1013
        %v1015 = vpop.f32.mrb[0].mxu0
        %v1016 = vadd.f32 0.0, %v1015
        %v1017 = vpop.f32.mrb[0].mxu0
        %v1018 = vadd.f32 0.0, %v1017
        %1019 = vmatprep.mubr.bf16.mxu0 0
        %1020 = vmatmul.mubr.bf16.gmra.mrb[0].mxu0 %v863
        %v1021 = vpop.f32.mrb[0].mxu0
        %v1022 = vadd.f32 0.0, %v1021
        %v1023 = vpop.f32.mrb[0].mxu0
        %v1024 = vadd.f32 0.0, %v1023
        %v1025 = vpop.f32.mrb[0].mxu0
        %v1026 = vadd.f32 0.0, %v1025
        %v1027 = vpop.f32.mrb[0].mxu0
        %v1028 = vadd.f32 0.0, %v1027
        %1029 = vmatprep.mubr.bf16.mxu0 0
        %1030 = vmatmul.mubr.bf16.gmra.mrb[0].mxu0 %v866
        %v1031 = vpop.f32.mrb[0].mxu0
        %v1032 = vadd.f32 0.0, %v1031
        %v1033 = vpop.f32.mrb[0].mxu0
        %v1034 = vadd.f32 0.0, %v1033
        %v1035 = vpop.f32.mrb[0].mxu0
        %v1036 = vadd.f32 0.0, %v1035
        %v1037 = vpop.f32.mrb[0].mxu0
        %v1038 = vadd.f32 0.0, %v1037
        %1039 = vmatprep.mubr.bf16.mxu0 0
        %1040 = vmatmul.mubr.bf16.gmra.mrb[0].mxu0 %v869
        %v1041 = vpop.f32.mrb[0].mxu0
        %v1042 = vadd.f32 0.0, %v1041
        %v1043 = vpop.f32.mrb[0].mxu0
        %v1044 = vadd.f32 0.0, %v1043
        %v1045 = vpop.f32.mrb[0].mxu0
        %v1046 = vadd.f32 0.0, %v1045
        %v1047 = vpop.f32.mrb[0].mxu0
        %v1048 = vadd.f32 0.0, %v1047
        %1049 = vmatprep.mubr.bf16.mxu0 0
        %1050 = vmatmul.mubr.bf16.gmra.mrb[0].mxu0 %v872
        %v1051 = vpop.f32.mrb[0].mxu0
        %v1052 = vadd.f32 0.0, %v1051
        %v1053 = vpop.f32.mrb[0].mxu0
        %v1054 = vadd.f32 0.0, %v1053
        %v1055 = vpop.f32.mrb[0].mxu0
        %v1056 = vadd.f32 0.0, %v1055
        %v1057 = vpop.f32.mrb[0].mxu0
        %v1058 = vadd.f32 0.0, %v1057
        %1059 = vmatprep.mubr.bf16.mxu0 0
        %1060 = vmatmul.mubr.bf16.gmra.mrb[0].mxu0 %v875
        %v1061 = vpop.f32.mrb[0].mxu0
        %v1062 = vadd.f32 0.0, %v1061
        %v1063 = vpop.f32.mrb[0].mxu0
        %v1064 = vadd.f32 0.0, %v1063
        %v1065 = vpop.f32.mrb[0].mxu0
        %v1066 = vadd.f32 0.0, %v1065
        %v1067 = vpop.f32.mrb[0].mxu0
        %v1068 = vadd.f32 0.0, %v1067
        %1069 = vdwg.mxu0
        %v1070 = vmax.f32 %v912, %v922
        %v1071 = vmax.f32 %v916, %v926
        %v1072 = vmax.f32 %v1070, %v932
        %v1073 = vmax.f32 %v1071, %v936
        %v1074 = vmax.f32 %v1072, %v942
        %v1075 = vmax.f32 %v1073, %v946
        %v1076 = vmax.f32 %v1074, %v952
        %v1077 = vmax.f32 %v1075, %v956
        %v1078 = vmax.f32 %v1076, %v962
        %v1079 = vmax.f32 %v1077, %v966
        %v1080 = vmax.f32 %v1078, %v972
        %v1081 = vmax.f32 %v1079, %v976
        %v1082 = vmax.f32 %v1080, %v982
        %v1083 = vmax.f32 %v1081, %v986
        %v1084 = vmax.f32 %v1082, %v992
        %v1085 = vmax.f32 %v1083, %v996
        %v1086 = vmax.f32 %v1084, %v1002
        %v1087 = vmax.f32 %v1085, %v1006
        %v1088 = vmax.f32 %v1086, %v1012
        %v1089 = vmax.f32 %v1087, %v1016
        %v1090 = vmax.f32 %v1088, %v1022
        %v1091 = vmax.f32 %v1089, %v1026
        %v1092 = vmax.f32 %v1090, %v1032
        %v1093 = vmax.f32 %v1091, %v1036
        %v1094 = vmax.f32 %v1092, %v1042
        %v1095 = vmax.f32 %v1093, %v1046
        %v1096 = vmax.f32 %v1094, %v1052
        %v1097 = vmax.f32 %v1095, %v1056
        %v1098 = vmax.f32 %v1096, %v1062
        %v1099 = vmax.f32 %v1097, %v1066
        %v1100 = vmax.f32 %v1098, %v1099
        %v1101 = vrot.slane %v1100, 4
        %v1102 = vmax.f32 %v1100, %v1101
        %v1103 = vrot.slane %v1102, 2
        %v1104 = vmax.f32 %v1102, %v1103
        %v1105 = vrot.slane %v1104, 1
        %v1106 = vmax.f32 %v1104, %v1105
        %v1107 = vmax.f32 %v914, %v924
        %v1108 = vmax.f32 %v918, %v928
        %v1109 = vmax.f32 %v1107, %v934
        %v1110 = vmax.f32 %v1108, %v938
        %v1111 = vmax.f32 %v1109, %v944
        %v1112 = vmax.f32 %v1110, %v948
        %v1113 = vmax.f32 %v1111, %v954
        %v1114 = vmax.f32 %v1112, %v958
        %v1115 = vmax.f32 %v1113, %v964
        %v1116 = vmax.f32 %v1114, %v968
        %v1117 = vmax.f32 %v1115, %v974
        %v1118 = vmax.f32 %v1116, %v978
        %v1119 = vmax.f32 %v1117, %v984
        %v1120 = vmax.f32 %v1118, %v988
        %v1121 = vmax.f32 %v1119, %v994
        %v1122 = vmax.f32 %v1120, %v998
        %v1123 = vmax.f32 %v1121, %v1004
        %v1124 = vmax.f32 %v1122, %v1008
        %v1125 = vmax.f32 %v1123, %v1014
        %v1126 = vmax.f32 %v1124, %v1018
        %v1127 = vmax.f32 %v1125, %v1024
        %v1128 = vmax.f32 %v1126, %v1028
        %v1129 = vmax.f32 %v1127, %v1034
        %v1130 = vmax.f32 %v1128, %v1038
        %v1131 = vmax.f32 %v1129, %v1044
        %v1132 = vmax.f32 %v1130, %v1048
        %v1133 = vmax.f32 %v1131, %v1054
        %v1134 = vmax.f32 %v1132, %v1058
        %v1135 = vmax.f32 %v1133, %v1064
        %v1136 = vmax.f32 %v1134, %v1068
        %v1137 = vmax.f32 %v1135, %v1136
        %v1138 = vrot.slane %v1137, 4
        %v1139 = vmax.f32 %v1137, %v1138
        %v1140 = vrot.slane %v1139, 2
        %v1141 = vmax.f32 %v1139, %v1140
        %v1142 = vrot.slane %v1141, 1
        %v1143 = vmax.f32 %v1141, %v1142
        %v1144 = vsub.f32 %v912, %v1106
        %v1145 = vsub.f32 %v914, %v1143
        %v1146 = vsub.f32 %v916, %v1106
        %v1147 = vsub.f32 %v918, %v1143
        %v1148 = vsub.f32 %v922, %v1106
        %v1149 = vsub.f32 %v924, %v1143
        %v1150 = vsub.f32 %v926, %v1106
        %v1151 = vsub.f32 %v928, %v1143
        %v1152 = vsub.f32 %v932, %v1106
        %v1153 = vsub.f32 %v934, %v1143
        %v1154 = vsub.f32 %v936, %v1106
        %v1155 = vsub.f32 %v938, %v1143
        %v1156 = vsub.f32 %v942, %v1106
        %v1157 = vsub.f32 %v944, %v1143
        %v1158 = vsub.f32 %v946, %v1106
        %v1159 = vsub.f32 %v948, %v1143
        %v1160 = vsub.f32 %v952, %v1106
        %v1161 = vsub.f32 %v954, %v1143
        %v1162 = vsub.f32 %v956, %v1106
        %v1163 = vsub.f32 %v958, %v1143
        %v1164 = vsub.f32 %v962, %v1106
        %v1165 = vsub.f32 %v964, %v1143
        %v1166 = vsub.f32 %v966, %v1106
        %v1167 = vsub.f32 %v968, %v1143
        %v1168 = vsub.f32 %v972, %v1106
        %v1169 = vsub.f32 %v974, %v1143
        %v1170 = vsub.f32 %v976, %v1106
        %v1171 = vsub.f32 %v978, %v1143
        %v1172 = vsub.f32 %v982, %v1106
        %v1173 = vsub.f32 %v984, %v1143
        %v1174 = vsub.f32 %v986, %v1106
        %v1175 = vsub.f32 %v988, %v1143
        %v1176 = vsub.f32 %v992, %v1106
        %v1177 = vsub.f32 %v994, %v1143
        %v1178 = vsub.f32 %v996, %v1106
        %v1179 = vsub.f32 %v998, %v1143
        %v1180 = vsub.f32 %v1002, %v1106
        %v1181 = vsub.f32 %v1004, %v1143
        %v1182 = vsub.f32 %v1006, %v1106
        %v1183 = vsub.f32 %v1008, %v1143
        %v1184 = vsub.f32 %v1012, %v1106
        %v1185 = vsub.f32 %v1014, %v1143
        %v1186 = vsub.f32 %v1016, %v1106
        %v1187 = vsub.f32 %v1018, %v1143
        %v1188 = vsub.f32 %v1022, %v1106
        %v1189 = vsub.f32 %v1024, %v1143
        %v1190 = vsub.f32 %v1026, %v1106
        %v1191 = vsub.f32 %v1028, %v1143
        %v1192 = vsub.f32 %v1032, %v1106
        %v1193 = vsub.f32 %v1034, %v1143
        %v1194 = vsub.f32 %v1036, %v1106
        %v1195 = vsub.f32 %v1038, %v1143
        %v1196 = vsub.f32 %v1042, %v1106
        %v1197 = vsub.f32 %v1044, %v1143
        %v1198 = vsub.f32 %v1046, %v1106
        %v1199 = vsub.f32 %v1048, %v1143
        %v1200 = vsub.f32 %v1052, %v1106
        %v1201 = vsub.f32 %v1054, %v1143
        %v1202 = vsub.f32 %v1056, %v1106
        %v1203 = vsub.f32 %v1058, %v1143
        %v1204 = vsub.f32 %v1062, %v1106
        %v1205 = vsub.f32 %v1064, %v1143
        %v1206 = vsub.f32 %v1066, %v1106
        %v1207 = vsub.f32 %v1068, %v1143
        %v1208 = vmul.f32 %v1144, 1.442695
        %v1209 = vpow.pop %v1208
        %v1210 = vmul.f32 %v1145, 1.442695
        %v1211 = vpow.pop %v1210
        %v1212 = vmul.f32 %v1146, 1.442695
        %v1213 = vpow.pop %v1212
        %v1214 = vmul.f32 %v1147, 1.442695
        %v1215 = vpow.pop %v1214
        %v1216 = vmul.f32 %v1148, 1.442695
        %v1217 = vpow.pop %v1216
        %v1218 = vmul.f32 %v1149, 1.442695
        %v1219 = vpow.pop %v1218
        %v1220 = vmul.f32 %v1150, 1.442695
        %v1221 = vpow.pop %v1220
        %v1222 = vmul.f32 %v1151, 1.442695
        %v1223 = vpow.pop %v1222
        %v1224 = vmul.f32 %v1152, 1.442695
        %v1225 = vpow.pop %v1224
        %v1226 = vmul.f32 %v1153, 1.442695
        %v1227 = vpow.pop %v1226
        %v1228 = vmul.f32 %v1154, 1.442695
        %v1229 = vpow.pop %v1228
        %v1230 = vmul.f32 %v1155, 1.442695
        %v1231 = vpow.pop %v1230
        %v1232 = vmul.f32 %v1156, 1.442695
        %v1233 = vpow.pop %v1232
        %v1234 = vmul.f32 %v1157, 1.442695
        %v1235 = vpow.pop %v1234
        %v1236 = vmul.f32 %v1158, 1.442695
        %v1237 = vpow.pop %v1236
        %v1238 = vmul.f32 %v1159, 1.442695
        %v1239 = vpow.pop %v1238
        %v1240 = vmul.f32 %v1160, 1.442695
        %v1241 = vpow.pop %v1240
        %v1242 = vmul.f32 %v1161, 1.442695
        %v1243 = vpow.pop %v1242
        %v1244 = vmul.f32 %v1162, 1.442695
        %v1245 = vpow.pop %v1244
        %v1246 = vmul.f32 %v1163, 1.442695
        %v1247 = vpow.pop %v1246
        %v1248 = vmul.f32 %v1164, 1.442695
        %v1249 = vpow.pop %v1248
        %v1250 = vmul.f32 %v1165, 1.442695
        %v1251 = vpow.pop %v1250
        %v1252 = vmul.f32 %v1166, 1.442695
        %v1253 = vpow.pop %v1252
        %v1254 = vmul.f32 %v1167, 1.442695
        %v1255 = vpow.pop %v1254
        %v1256 = vmul.f32 %v1168, 1.442695
        %v1257 = vpow.pop %v1256
        %v1258 = vmul.f32 %v1169, 1.442695
        %v1259 = vpow.pop %v1258
        %v1260 = vmul.f32 %v1170, 1.442695
        %v1261 = vpow.pop %v1260
        %v1262 = vmul.f32 %v1171, 1.442695
        %v1263 = vpow.pop %v1262
        %v1264 = vmul.f32 %v1172, 1.442695
        %v1265 = vpow.pop %v1264
        %v1266 = vmul.f32 %v1173, 1.442695
        %v1267 = vpow.pop %v1266
        %v1268 = vmul.f32 %v1174, 1.442695
        %v1269 = vpow.pop %v1268
        %v1270 = vmul.f32 %v1175, 1.442695
        %v1271 = vpow.pop %v1270
        %v1272 = vmul.f32 %v1176, 1.442695
        %v1273 = vpow.pop %v1272
        %v1274 = vmul.f32 %v1177, 1.442695
        %v1275 = vpow.pop %v1274
        %v1276 = vmul.f32 %v1178, 1.442695
        %v1277 = vpow.pop %v1276
        %v1278 = vmul.f32 %v1179, 1.442695
        %v1279 = vpow.pop %v1278
        %v1280 = vmul.f32 %v1180, 1.442695
        %v1281 = vpow.pop %v1280
        %v1282 = vmul.f32 %v1181, 1.442695
        %v1283 = vpow.pop %v1282
        %v1284 = vmul.f32 %v1182, 1.442695
        %v1285 = vpow.pop %v1284
        %v1286 = vmul.f32 %v1183, 1.442695
        %v1287 = vpow.pop %v1286
        %v1288 = vmul.f32 %v1184, 1.442695
        %v1289 = vpow.pop %v1288
        %v1290 = vmul.f32 %v1185, 1.442695
        %v1291 = vpow.pop %v1290
        %v1292 = vmul.f32 %v1186, 1.442695
        %v1293 = vpow.pop %v1292
        %v1294 = vmul.f32 %v1187, 1.442695
        %v1295 = vpow.pop %v1294
        %v1296 = vmul.f32 %v1188, 1.442695
        %v1297 = vpow.pop %v1296
        %v1298 = vmul.f32 %v1189, 1.442695
        %v1299 = vpow.pop %v1298
        %v1300 = vmul.f32 %v1190, 1.442695
        %v1301 = vpow.pop %v1300
        %v1302 = vmul.f32 %v1191, 1.442695
        %v1303 = vpow.pop %v1302
        %v1304 = vmul.f32 %v1192, 1.442695
        %v1305 = vpow.pop %v1304
        %v1306 = vmul.f32 %v1193, 1.442695
        %v1307 = vpow.pop %v1306
        %v1308 = vmul.f32 %v1194, 1.442695
        %v1309 = vpow.pop %v1308
        %v1310 = vmul.f32 %v1195, 1.442695
        %v1311 = vpow.pop %v1310
        %v1312 = vmul.f32 %v1196, 1.442695
        %v1313 = vpow.pop %v1312
        %v1314 = vmul.f32 %v1197, 1.442695
        %v1315 = vpow.pop %v1314
        %v1316 = vmul.f32 %v1198, 1.442695
        %v1317 = vpow.pop %v1316
        %v1318 = vmul.f32 %v1199, 1.442695
        %v1319 = vpow.pop %v1318
        %v1320 = vmul.f32 %v1200, 1.442695
        %v1321 = vpow.pop %v1320
        %v1322 = vmul.f32 %v1201, 1.442695
        %v1323 = vpow.pop %v1322
        %v1324 = vmul.f32 %v1202, 1.442695
        %v1325 = vpow.pop %v1324
        %v1326 = vmul.f32 %v1203, 1.442695
        %v1327 = vpow.pop %v1326
        %v1328 = vmul.f32 %v1204, 1.442695
        %v1329 = vpow.pop %v1328
        %v1330 = vmul.f32 %v1205, 1.442695
        %v1331 = vpow.pop %v1330
        %v1332 = vmul.f32 %v1206, 1.442695
        %v1333 = vpow.pop %v1332
        %v1334 = vmul.f32 %v1207, 1.442695
        %v1335 = vpow.pop %v1334
        %v1336 = vpack.c.bf16 %v1213, %v1209
        %v1337 = vpack.c.bf16 %v1215, %v1211
        %v1338 = vpack.c.bf16 %v1221, %v1217
        %v1339 = vpack.c.bf16 %v1223, %v1219
        %v1340 = vpack.c.bf16 %v1229, %v1225
        %v1341 = vpack.c.bf16 %v1231, %v1227
        %v1342 = vpack.c.bf16 %v1237, %v1233
        %v1343 = vpack.c.bf16 %v1239, %v1235
        %v1344 = vpack.c.bf16 %v1245, %v1241
        %v1345 = vpack.c.bf16 %v1247, %v1243
        %v1346 = vpack.c.bf16 %v1253, %v1249
        %v1347 = vpack.c.bf16 %v1255, %v1251
        %v1348 = vpack.c.bf16 %v1261, %v1257
        %v1349 = vpack.c.bf16 %v1263, %v1259
        %v1350 = vpack.c.bf16 %v1269, %v1265
        %v1351 = vpack.c.bf16 %v1271, %v1267
        %v1352 = vpack.c.bf16 %v1277, %v1273
        %v1353 = vpack.c.bf16 %v1279, %v1275
        %v1354 = vpack.c.bf16 %v1285, %v1281
        %v1355 = vpack.c.bf16 %v1287, %v1283
        %v1356 = vpack.c.bf16 %v1293, %v1289
        %v1357 = vpack.c.bf16 %v1295, %v1291
        %v1358 = vpack.c.bf16 %v1301, %v1297
        %v1359 = vpack.c.bf16 %v1303, %v1299
        %v1360 = vpack.c.bf16 %v1309, %v1305
        %v1361 = vpack.c.bf16 %v1311, %v1307
        %v1362 = vpack.c.bf16 %v1317, %v1313
        %v1363 = vpack.c.bf16 %v1319, %v1315
        %v1364 = vpack.c.bf16 %v1325, %v1321
        %v1365 = vpack.c.bf16 %v1327, %v1323
        %v1366 = vpack.c.bf16 %v1333, %v1329
        %v1367 = vpack.c.bf16 %v1335, %v1331
        %1368 = vmatprep.subr.bf16.mxu0 %v1337
        %1369 = vmatpush1.bf16.msra.mxu0 %v1336
        %1370 = vmatprep.subr.bf16.mxu0 %v1339
        %1371 = vmatpush1.bf16.msra.mxu0 %v1338
        %1372 = vmatprep.subr.bf16.mxu0 %v1341
        %1373 = vmatpush1.bf16.msra.mxu0 %v1340
        %1374 = vmatprep.subr.bf16.mxu0 %v1343
        %1375 = vmatpush1.bf16.msra.mxu0 %v1342
        %1376 = vmatprep.subr.bf16.mxu0 %v1345
        %1377 = vmatpush1.bf16.msra.mxu0 %v1344
        %1378 = vmatprep.subr.bf16.mxu0 %v1347
        %1379 = vmatpush1.bf16.msra.mxu0 %v1346
        %1380 = vmatprep.subr.bf16.mxu0 %v1349
        %1381 = vmatpush1.bf16.msra.mxu0 %v1348
        %1382 = vmatprep.subr.bf16.mxu0 %v1351
        %1383 = vmatpush1.bf16.msra.mxu0 %v1350
        %1384 = vmatprep.subr.bf16.mxu0 %v1353
        %1385 = vmatpush1.bf16.msra.mxu0 %v1352
        %1386 = vmatprep.subr.bf16.mxu0 %v1355
        %1387 = vmatpush1.bf16.msra.mxu0 %v1354
        %1388 = vmatprep.subr.bf16.mxu0 %v1357
        %1389 = vmatpush1.bf16.msra.mxu0 %v1356
        %1390 = vmatprep.subr.bf16.mxu0 %v1359
        %1391 = vmatpush1.bf16.msra.mxu0 %v1358
        %1392 = vmatprep.subr.bf16.mxu0 %v1361
        %1393 = vmatpush1.bf16.msra.mxu0 %v1360
        %1394 = vmatprep.subr.bf16.mxu0 %v1363
        %1395 = vmatpush1.bf16.msra.mxu0 %v1362
        %1396 = vmatprep.subr.bf16.mxu0 %v1365
        %1397 = vmatpush1.bf16.msra.mxu0 %v1364
        %1398 = vmatprep.subr.bf16.mxu0 %v1367
        %1399 = vmatpush1.bf16.msra.mxu0 %v1366
        %1400 = vmatprep.mubr.bf16.mxu0 %v795
        %1401 = vmatmul.mubr.bf16.gmra.mrb[0].mxu0 %v794
        %v1402 = vpop.f32.mrb[0].mxu0
        %v1403 = vadd.f32 0.0, %v1402
        %v1404 = vpop.f32.mrb[0].mxu0
        %v1405 = vadd.f32 0.0, %v1404
        %v1406 = vpop.f32.mrb[0].mxu0
        %v1407 = vadd.f32 0.0, %v1406
        %v1408 = vpop.f32.mrb[0].mxu0
        %v1409 = vadd.f32 0.0, %v1408
        %1410 = vdwg.mxu0
        %s1411 = sld [smem:[#allocation2]]
        %v1412 = vrcp.pop %v1407
        %v1413 = vrcp.pop %v1409
        %v1414 = vstv %s1411
        %v1415 = vmul.f32 %v1414, %v1412
        %v1416 = vmul.f32 %v1414, %v1413
        %v1417 = vlaneseq
        %v1418 = vshrl.u32 %v1417, 7
        %v1419 = vsub.s32 4, %v1418
        %v1420 = vrot.slane %v1415, %v1419
        %v1421 = vlaneseq
        %v1422 = vshrl.u32 %v1421, 7
        %v1423 = vsub.s32 4, %v1422
        %v1424 = vrot.slane %v1416, %v1423
        %v1425 = vmul.f32 %v1403, %v1420
        %v1426 = vmul.f32 %v1405, %v1424
        %v1427 = vmul.f32 %v1407, %v1420
        %v1428 = vmul.f32 %v1409, %v1424
        %v1429 = vpack.c.bf16 %v1427, %v1425
        %v1430 = vpack.c.bf16 %v1428, %v1426
        %v1431 = vld [vmem:[%s6] sm:$0xf]
        %v1432 = vld [vmem:[%s6 + $0x4] sm:$0xf]
        %v1433 = vld [vmem:[%s6 + $0x8] sm:$0xf]
        %v1434 = vld [vmem:[%s6 + $0xc] sm:$0xf]
        %v1439 = vunpack.c.l.b16 %v1431
        %v1440 = vunpack.c.l.b16 %v1432
        %v1441 = vunpack.c.l.b16 %v1433
        %v1442 = vunpack.c.l.b16 %v1434
        %v1443 = vpack.c.b16 %v1440, %v1439
        %v1444 = vpack.c.b16 %v1442, %v1441
        %v1446 = vsel %vm828, %v1443, 0
        %v1449 = vsel %vm828, %v1444, 0
        %1451 = vmatprep.subr.bf16.mxu0 %v1430
        %1452 = vmatpush1.bf16.msra.mxu0 %v1429
        %1453 = vmatprep.subr.bf16.mxu0 0
        %1454 = vmatpush1.bf16.msra.mxu0 0
        %1455 = vmatprep.subr.bf16.mxu0 0
        %1456 = vmatpush1.bf16.msra.mxu0 0
        %1457 = vmatprep.subr.bf16.mxu0 0
        %1458 = vmatpush1.bf16.msra.mxu0 0
        %1459 = vmatprep.subr.bf16.mxu0 0
        %1460 = vmatpush1.bf16.msra.mxu0 0
        %1461 = vmatprep.subr.bf16.mxu0 0
        %1462 = vmatpush1.bf16.msra.mxu0 0
        %1463 = vmatprep.subr.bf16.mxu0 0
        %1464 = vmatpush1.bf16.msra.mxu0 0
        %1465 = vmatprep.subr.bf16.mxu0 0
        %1466 = vmatpush1.bf16.msra.mxu0 0
        %1467 = vmatprep.subr.bf16.mxu0 0
        %1468 = vmatpush1.bf16.msra.mxu0 0
        %1469 = vmatprep.subr.bf16.mxu0 0
        %1470 = vmatpush1.bf16.msra.mxu0 0
        %1471 = vmatprep.subr.bf16.mxu0 0
        %1472 = vmatpush1.bf16.msra.mxu0 0
        %1473 = vmatprep.subr.bf16.mxu0 0
        %1474 = vmatpush1.bf16.msra.mxu0 0
        %1475 = vmatprep.subr.bf16.mxu0 0
        %1476 = vmatpush1.bf16.msra.mxu0 0
        %1477 = vmatprep.subr.bf16.mxu0 0
        %1478 = vmatpush1.bf16.msra.mxu0 0
        %1479 = vmatprep.subr.bf16.mxu0 0
        %1480 = vmatpush1.bf16.msra.mxu0 0
        %1481 = vmatprep.subr.bf16.mxu0 0
        %1482 = vmatpush1.bf16.msra.mxu0 0
        %1483 = vmatprep.mubr.bf16.mxu0 0
        %1484 = vmatmul.mubr.bf16.gmra.mrb[0].mxu0 %v1446
        %v1485 = vpop.f32.mrb[0].mxu0
        %v1486 = vadd.f32 %v774, %v1485
        %v1487 = vpop.f32.mrb[0].mxu0
        %v1488 = vadd.f32 %v775, %v1487
        %v1489 = vpop.f32.mrb[0].mxu0
        %v1490 = vadd.f32 %v776, %v1489
        %v1491 = vpop.f32.mrb[0].mxu0
        %v1492 = vadd.f32 %v777, %v1491
        %1493 = vmatprep.mubr.bf16.mxu0 0
        %1494 = vmatmul.mubr.bf16.gmra.mrb[0].mxu0 %v1449
        %v1495 = vpop.f32.mrb[0].mxu0
        %v1496 = vadd.f32 %v778, %v1495
        %v1497 = vpop.f32.mrb[0].mxu0
        %v1498 = vadd.f32 %v779, %v1497
        %v1499 = vpop.f32.mrb[0].mxu0
        %v1500 = vadd.f32 %v780, %v1499
        %v1501 = vpop.f32.mrb[0].mxu0
        %v1502 = vadd.f32 %v781, %v1501
        %1503 = vdwg.mxu0
        %v1504 = vxor.u32 %v1486, 2147483648
        %v1505 = vxor.u32 %v1488, 2147483648
        %v1506 = vmul.f32 %v1504, 1.442695
        %v1507 = vpow.pop %v1506
        %v1508 = vmul.f32 %v1505, 1.442695
        %v1509 = vpow.pop %v1508
        %v1510 = vadd.f32 %v1507, 1.0
        %v1511 = vadd.f32 %v1509, 1.0
        %v1512 = vrcp.pop %v1510
        %v1513 = vmul.f32 1.0, %v1512
        %v1514 = vrcp.pop %v1511
        %v1515 = vmul.f32 1.0, %v1514
        %v1516 = vxor.u32 %v1490, 2147483648
        %v1517 = vxor.u32 %v1492, 2147483648
        %v1518 = vmul.f32 %v1516, 1.442695
        %v1519 = vpow.pop %v1518
        %v1520 = vmul.f32 %v1517, 1.442695
        %v1521 = vpow.pop %v1520
        %v1522 = vadd.f32 %v1519, 1.0
        %v1523 = vadd.f32 %v1521, 1.0
        %v1524 = vrcp.pop %v1522
        %v1525 = vmul.f32 1.0, %v1524
        %v1526 = vrcp.pop %v1523
        %v1527 = vmul.f32 1.0, %v1526
        %v1528 = vxor.u32 %v1496, 2147483648
        %v1529 = vxor.u32 %v1498, 2147483648
        %v1530 = vmul.f32 %v1528, 1.442695
        %v1531 = vpow.pop %v1530
        %v1532 = vmul.f32 %v1529, 1.442695
        %v1533 = vpow.pop %v1532
        %v1534 = vadd.f32 %v1531, 1.0
        %v1535 = vadd.f32 %v1533, 1.0
        %v1536 = vrcp.pop %v1534
        %v1537 = vmul.f32 1.0, %v1536
        %v1538 = vrcp.pop %v1535
        %v1539 = vmul.f32 1.0, %v1538
        %v1540 = vtanh.pop %v1500
        %v1541 = vtanh.pop %v1502
        %v1542 = vld [vmem:[%s413] sm:$0xff]
        %v1543 = vld [vmem:[%s413 + $0x8] sm:$0xff]
        %v1544 = vmul.f32 %v1525, %v1542
        %v1545 = vmul.f32 %v1527, %v1543
        %v1546 = vmul.f32 %v1513, %v1540
        %v1547 = vmul.f32 %v1515, %v1541
        %v1548 = vadd.f32 %v1544, %v1546
        %v1549 = vadd.f32 %v1545, %v1547
        %v1550 = vtanh.pop %v1548
        %v1551 = vtanh.pop %v1549
        %v1552 = vmul.f32 %v1537, %v1550
        %v1553 = vmul.f32 %v1539, %v1551
        %1554 = vst [vmem:[%s387] sm:$0xff] %v1552
        %1555 = vst [vmem:[%s387 + $0x8] sm:$0xff] %v1553
        %1556 = vst [vmem:[%s394] sm:$0xff] %v1548
        %1557 = vst [vmem:[%s394 + $0x8] sm:$0xff] %v1549
        %s1558 = sand.u32 %s235, 1
        %s1559 = scalar_lea.sflag [#allocation4], %s1558
        %s1560 = sand.u32 %s235, 1
        %s1561 = smul.addr %s1560, 16
        %s1562 = scalar_lea.vmem [#allocation3], %s1561
        %s1563 = sand.u32 %s263, 1
        %s1564 = scalar_lea.sflag [#allocation6], %s1563
        %s1565 = sand.u32 %s263, 1
        %s1566 = smul.addr %s1565, 16
        %s1567 = scalar_lea.vmem [#allocation5], %s1566
        // Predicated region
        $region53: #{tpu_custom_call.1} parent=51 // pred_check
          %p1568 = pneg %p245
        $region54: #{tpu_custom_call.1} parent=51 // pred_check_branch
          %1570 = sbr.rel (%p1568) target = $region56
        $region55: #{tpu_custom_call.1} parent=51 // pred_region
          %s1571 = smul.u32 2, %s33
          %s1573 = ssub.s32 256, 256
          %1574 = vsyncadd %s1559, %s1573
          %s1575 = smul.addr %s32, 2
          %s1576 = sadd.s32 %s1571, %s1575
          %s1577 = smul.addr %s1576, 128
          %s1578 = scalar_lea.hbm %s8, %s1577
          %s1580 = sshll.u32 %s1562, 4
          %s1581 = int_to_ptr.vmem [resolvable:$true] %s1580
          %1583 = dma.vmem_to_hbm [thread:$0]  %s1581, 256, %s1578, %s1559
        $region56: #{tpu_custom_call.1} parent=51 // pred_fallthru
          _
        // Predicated region
        $region57: #{tpu_custom_call.1} parent=51 // pred_check
          %p1584 = pneg %p273
        $region58: #{tpu_custom_call.1} parent=51 // pred_check_branch
          %1586 = sbr.rel (%p1584) target = $region60
        $region59: #{tpu_custom_call.1} parent=51 // pred_region
          %s1587 = smul.u32 2, %s33
          %s1589 = ssub.s32 256, 256
          %1590 = vsyncadd %s1564, %s1589
          %s1591 = smul.addr %s32, 2
          %s1592 = sadd.s32 %s1587, %s1591
          %s1593 = smul.addr %s1592, 128
          %s1594 = scalar_lea.hbm %s9, %s1593
          %s1596 = sshll.u32 %s1567, 4
          %s1597 = int_to_ptr.vmem [resolvable:$true] %s1596
          %1599 = dma.vmem_to_hbm [thread:$0]  %s1597, 256, %s1594, %s1564
        $region60: #{tpu_custom_call.1} parent=51 // pred_fallthru
          _
      $region52: #{tpu_custom_call.1} parent=5 // pred_fallthru
        _
      %p1600 = scmp.le.s32.totalorder 2, %s23
      // Predicated region
      $region61: #{tpu_custom_call.1} parent=5 // pred_check
        %p1601 = pneg %p1600
      $region62: #{tpu_custom_call.1} parent=5 // pred_check_branch
        %1603 = sbr.rel (%p1601) target = $region64
      $region63: #{tpu_custom_call.1} parent=5 // pred_region
        %s1604 = ssub.s32 %s23, 2
        // Predicated region
        $region65: #{tpu_custom_call.1} parent=63 // pred_check
          %p1605 = pneg %p251
        $region66: #{tpu_custom_call.1} parent=63 // pred_check_branch
          %1607 = sbr.rel (%p1605) target = $region68
        $region67: #{tpu_custom_call.1} parent=63 // pred_region
          %s1608 = sand.u32 %s236, 1
          %s1609 = scalar_lea.sflag [#allocation4], %s1608
          %s1610 = sand.u32 %s236, 1
          %s1611 = smul.addr %s1610, 16
          %s1612 = scalar_lea.vmem [#allocation3], %s1611
          %1613 = dma.done %s1609, 256
        $region68: #{tpu_custom_call.1} parent=63 // pred_fallthru
          _
        // Predicated region
        $region69: #{tpu_custom_call.1} parent=63 // pred_check
          %p1614 = pneg %p279
        $region70: #{tpu_custom_call.1} parent=63 // pred_check_branch
          %1616 = sbr.rel (%p1614) target = $region72
        $region71: #{tpu_custom_call.1} parent=63 // pred_region
          %s1617 = sand.u32 %s264, 1
          %s1618 = scalar_lea.sflag [#allocation6], %s1617
          %s1619 = sand.u32 %s264, 1
          %s1620 = smul.addr %s1619, 16
          %s1621 = scalar_lea.vmem [#allocation5], %s1620
          %1622 = dma.done %s1618, 256
        $region72: #{tpu_custom_call.1} parent=63 // pred_fallthru
          _
      $region64: #{tpu_custom_call.1} parent=5 // pred_fallthru
        _
    $region6: #{tpu_custom_call.1} parent=1 // loop_footer
      %s27 = sadd.s32 1, %s23
    $region7: #{tpu_custom_call.1} parent=1 // loop_footer_branch
      %22 = sbr.rel target = $region3
    $region8: #{tpu_custom_call.1} parent=1 // loop_exit
      _
    %1623 = vsyncpa [#allocation4], 1
    %s1624 = scalar_lea.sflag [#allocation4], 1
    %1625 = vsyncpa %s1624, 1
    %1626 = vsyncpa [#allocation6], 1
    %s1627 = scalar_lea.sflag [#allocation6], 1
    %1628 = vsyncpa %s1627, 1

</llo_original>
